<compile_context>
chip_gen: v7x
topology: tpu7x:2x2x1
jax: 0.10.0
libtpu: 0.0.40
codegen_flags: <defaults>
</compile_context>

<pallas_src>
import functools
import math

import jax
import jax.numpy as jnp
import numpy as np
from jax.experimental import pallas as pl
from jax.experimental.pallas import tpu as pltpu


# ---------------------------------------------------------------------------
# Pallas kernel: halo-slice lag views -> temporal enc -> kernel MLP (bf16 MXU)
# -> sublane-broadcast multiply-reduce -> + 1x1 skip.  Lane-dense throughout.
# ---------------------------------------------------------------------------
def _cont_conv_kernel(t_ref, m_ref, f_ref, invpos_ref, offs_ref,
                      w1t_ref, b1_ref, w2t_ref, b2_ref, wskt_ref, bsk_ref,
                      out_ref, *, shifts, seq_len, pad):
    L, P = seq_len, pad
    f32 = jnp.float32
    mxu = jnp.bfloat16

    t_full = t_ref[0]          # (1, L+P)     times, left halo of P zeros
    m_full = m_ref[0]          # (1, L+P)     non-pad mask (f32), halo zeros
    f_full = f_ref[0]          # (C_in, L+P)  features, channels on sublanes

    t_cur = t_full[:, P:P + L]                 # (1, L)
    m_cur = m_full[:, P:P + L]                 # (1, L)
    feat = f_full[:, P:P + L]                  # (C_in, L)

    inv_pos = invpos_ref[...]                  # (C_in, 1)
    offs = offs_ref[...]                       # (C_in, 1)  0 / pi/2 per channel
    w1t = w1t_ref[...]                         # (H, C_in)         bf16
    b1 = b1_ref[...]                           # (H, 1)            f32
    w2t = w2t_ref[...]                         # (C_in*C_out, H)   bf16
    b2 = b2_ref[...]                           # (C_in*C_out, 1)   f32

    C_in = f_full.shape[0]
    C_out = out_ref.shape[1]

    conv = jnp.zeros((C_out, L), f32)
    for s in shifts:                           # K is small and static
        # Lagged views: static lane slices into the zero halo (no roll, no gather,
        # no K-fold HBM duplication).  Halo zeros make the shifted mask 0 there.
        t_sh = t_full[:, P - s:P - s + L]      # (1, L)
        m_sh = m_full[:, P - s:P - s + L]      # (1, L)
        f_sh = f_full[:, P - s:P - s + L]      # (C_in, L)

        valid = m_sh * m_cur                   # dt_mask, (1, L)
        delta = (t_cur - t_sh) * valid         # (1, L)
        fk = f_sh * valid                      # masked lag features, (C_in, L)

        # Temporal encoding: sin on even channels, cos on odd == sin(x + offs).
        te = jnp.sin(delta * inv_pos + offs)   # (C_in, L), f32 EUP

        # Kernel MLP, lane-dense; bf16 MXU operands, f32 accumulation.
        h = jnp.dot(w1t, te.astype(mxu), preferred_element_type=f32) + b1   # (H, L)
        h = jnp.where(h >= 0, h, 0.1 * h)      # LeakyReLU(0.1)
        kv = jnp.dot(w2t, h.astype(mxu), preferred_element_type=f32) + b2   # (C_in*C_out, L)

        # out[o, l] += sum_c fk[c, l] * kv[c*C_out + o, l]
        # Sublane-broadcast multiply + C_in reduction (VPU), no E-expansion matmul.
        kv3 = kv.reshape(C_in, C_out, L)
        conv = conv + jnp.sum(fk[:, None, :] * kv3, axis=0)                 # (C_out, L)

    # 1x1 skip connection (Conv1d kernel_size=1), lane-dense.
    skip = jnp.dot(wskt_ref[...], feat.astype(mxu),
                   preferred_element_type=f32) + bsk_ref[...]               # (C_out, L)

    out_ref[0] = (conv + skip).astype(out_ref.dtype)


# ---------------------------------------------------------------------------
# Wrapper
# ---------------------------------------------------------------------------
def cont_conv1d_pallas(times, features, non_pad_mask, params, *, kernel_size,
                       dilation=1, include_zero_lag=False, eps=1e-5):
    B, L, C_in = features.shape
    C_out = params["w_skip"].shape[1]
    H = params["w1"].shape[1]
    K = kernel_size
    z = 1 if include_zero_lag else 0
    shifts = tuple((K - k - z) * dilation for k in range(K))
    P = max(shifts)

    f32 = jnp.float32
    mxu = jnp.bfloat16

    # Lane-dense streams (channels on sublanes, time on lanes) with a left halo of
    # P zeros so each lag shift becomes a static in-register lane slice.
    times_p = jnp.pad(times.astype(f32), ((0, 0), (P, 0))).reshape(B, 1, L + P)
    mask_p = jnp.pad(non_pad_mask.astype(f32), ((0, 0), (P, 0))).reshape(B, 1, L + P)
    feat_t = jnp.transpose(features.astype(f32), (0, 2, 1))            # (B, C_in, L)
    feat_p = jnp.pad(feat_t, ((0, 0), (0, 0), (P, 0)))                 # (B, C_in, L+P)

    inv_pos = (1.0 / params["pos"]).reshape(C_in, 1).astype(f32)
    offs = jnp.asarray([0.0 if i % 2 == 0 else math.pi / 2.0 for i in range(C_in)],
                       f32).reshape(C_in, 1)

    w1t = params["w1"].T.astype(mxu)                                   # (H, C_in)
    b1 = params["b1"].reshape(H, 1).astype(f32)
    w2t = params["w2"].T.astype(mxu)                                   # (C_in*C_out, H)
    b2 = params["b2"].reshape(C_in * C_out, 1).astype(f32)
    wskt = params["w_skip"].T.astype(mxu)                              # (C_out, C_in)
    bsk = params["b_skip"].reshape(C_out, 1).astype(f32)

    kernel_fn = functools.partial(_cont_conv_kernel,
                                  shifts=shifts, seq_len=L, pad=P)

    out_t = pl.pallas_call(
        kernel_fn,
        out_shape=jax.ShapeDtypeStruct((B, C_out, L), f32),            # lane-dense output
        grid_spec=pltpu.PrefetchScalarGridSpec(
            num_scalar_prefetch=0,
            grid=(B,),
            in_specs=[
                pl.BlockSpec((1, 1, L + P), lambda b: (b, 0, 0)),      # times (+halo)
                pl.BlockSpec((1, 1, L + P), lambda b: (b, 0, 0)),      # mask  (+halo)
                pl.BlockSpec((1, C_in, L + P), lambda b: (b, 0, 0)),   # features (+halo)
                pl.BlockSpec((C_in, 1), lambda b: (0, 0)),             # inv_pos
                pl.BlockSpec((C_in, 1), lambda b: (0, 0)),             # offs
                pl.BlockSpec((H, C_in), lambda b: (0, 0)),             # w1^T (bf16)
                pl.BlockSpec((H, 1), lambda b: (0, 0)),                # b1
                pl.BlockSpec((C_in * C_out, H), lambda b: (0, 0)),     # w2^T (bf16)
                pl.BlockSpec((C_in * C_out, 1), lambda b: (0, 0)),     # b2
                pl.BlockSpec((C_out, C_in), lambda b: (0, 0)),         # w_skip^T (bf16)
                pl.BlockSpec((C_out, 1), lambda b: (0, 0)),            # b_skip
            ],
            out_specs=pl.BlockSpec((1, C_out, L), lambda b: (b, 0, 0)),
        ),
        compiler_params=pltpu.CompilerParams(
            dimension_semantics=("parallel",),
            vmem_limit_bytes=32 * 1024 * 1024),
    )(times_p, mask_p, feat_p, inv_pos, offs, w1t, b1, w2t, b2, wskt, bsk)

    # TODO(synk): BatchNorm1d (training-mode, cross-batch statistics) stays in plain
    # JAX — it needs a global reduction across the batch grid.  Centered variance
    # avoids the E[x^2]-E[x]^2 cancellation flagged in review; the final transpose
    # back to (B, L, C_out) is folded into the BN apply.
    mean = jnp.mean(out_t, axis=(0, 2), keepdims=True)
    var = jnp.mean(jnp.square(out_t - mean), axis=(0, 2), keepdims=True)   # biased, as in PyTorch
    out_t = (out_t - mean) * jax.lax.rsqrt(var + eps)
    out_t = (out_t * params["bn_gamma"].reshape(1, C_out, 1)
             + params["bn_beta"].reshape(1, C_out, 1))
    return jnp.transpose(out_t, (0, 2, 1))                             # (B, L, C_out)


# ---------------------------------------------------------------------------
# Pure-JAX reference (mirrors the PyTorch forward) for verification
# ---------------------------------------------------------------------------
def _shift_right(x, s, axis):
    if s == 0:
        return x
    L = x.shape[axis]
    pad = [(0, 0)] * x.ndim
    pad[axis] = (s, 0)
    xp = jnp.pad(x, pad)
    idx = [slice(None)] * x.ndim
    idx[axis] = slice(0, L)
    return xp[tuple(idx)]


def build_conv_matrix(times, features, non_pad_mask, kernel_size, dilation,
                      include_zero_lag):
    z = 1 if include_zero_lag else 0
    shifts = [(kernel_size - k - z) * dilation for k in range(kernel_size)]
    mask_f = non_pad_mask.astype(jnp.float32)
    g_times = jnp.stack([_shift_right(times, s, 1) for s in shifts], axis=1)
    g_mask = jnp.stack([_shift_right(mask_f, s, 1) for s in shifts], axis=1)
    g_feat = jnp.stack([_shift_right(features, s, 1) for s in shifts], axis=1)
    dt_mask = (g_mask > 0.5) & non_pad_mask[:, None, :]
    delta = jnp.where(dt_mask, times[:, None, :] - g_times, 0.0)
    feat_kern = jnp.where(dt_mask[..., None], g_feat, 0.0)
    return delta, feat_kern, dt_mask


def _batch_norm_ref(out, params, eps=1e-5):
    mean = out.mean(axis=(0, 1), keepdims=True)
    var = out.var(axis=(0, 1), keepdims=True)             # biased, as in PyTorch
    out = (out - mean) * jax.lax.rsqrt(var + eps)
    return out * params["bn_gamma"] + params["bn_beta"]


def cont_conv1d_reference(times, features, non_pad_mask, params, *, kernel_size,
                          dilation=1, include_zero_lag=False):
    B, L, C_in = features.shape
    C_out = params["w_skip"].shape[1]
    delta, feat_kern, dt_mask = build_conv_matrix(
        times, features, non_pad_mask, kernel_size, dilation, include_zero_lag)

    pos = params["pos"][0]
    phase = delta[..., None] / pos                                   # (B,K,L,C)
    idx = jnp.arange(C_in)
    te = jnp.where(idx % 2 == 0, jnp.sin(phase), jnp.cos(phase))
    h = te @ params["w1"] + params["b1"][0]
    h = jnp.where(h >= 0, h, 0.1 * h)
    kv = h @ params["w2"] + params["b2"][0]                          # (B,K,L,C_in*C_out)
    kv = kv.reshape(B, kernel_size, L, C_in, C_out)
    kv = kv * dt_mask[..., None, None]
    out = (feat_kern[..., None] * kv).sum(axis=(1, 3))               # (B,L,C_out)
    out = out + features @ params["w_skip"] + params["b_skip"][0]
    return _batch_norm_ref(out, params)


# ---------------------------------------------------------------------------
def init_params(key, in_channels, out_channels, hidden):
    ks = jax.random.split(key, 4)
    pos = jnp.asarray(
        [math.pow(10000.0, 2.0 * (i // 2) / in_channels)
         for i in range(in_channels)], jnp.float32).reshape(1, in_channels)
    w1 = jax.random.normal(ks[0], (in_channels, hidden), jnp.float32) / math.sqrt(in_channels)
    b1 = jnp.zeros((1, hidden), jnp.float32)
    w2 = jax.random.normal(ks[1], (hidden, in_channels * out_channels), jnp.float32) / math.sqrt(hidden)
    b2 = jnp.zeros((1, in_channels * out_channels), jnp.float32)
    w_skip = jax.random.normal(ks[2], (in_channels, out_channels), jnp.float32) / math.sqrt(in_channels)
    b_skip = 0.1 * jax.random.normal(ks[3], (1, out_channels), jnp.float32)
    bn_gamma = jnp.ones((out_channels,), jnp.float32)
    bn_beta = jnp.zeros((out_channels,), jnp.float32)
    return dict(pos=pos, w1=w1, b1=b1, w2=w2, b2=b2,
                w_skip=w_skip, b_skip=b_skip,
                bn_gamma=bn_gamma, bn_beta=bn_beta)


if __name__ == "__main__":
    B, L = 2, 16
    C_in, C_out, HID = 8, 8, 16
    KSIZE, DIL, ZERO_LAG = 3, 1, False

    key = jax.random.PRNGKey(0)
    k_t, k_f, k_p = jax.random.split(key, 3)

    # strictly increasing event times, padded tail on sequence 1
    inc = jax.random.uniform(k_t, (B, L), jnp.float32, minval=0.1, maxval=1.0)
    times = jnp.cumsum(inc, axis=1)
    features = jax.random.normal(k_f, (B, L, C_in), jnp.float32)
    lengths = jnp.asarray([L, 11], jnp.int32)
    non_pad_mask = jnp.arange(L)[None, :] < lengths[:, None]

    params = init_params(k_p, C_in, C_out, HID)

    out = cont_conv1d_pallas(times, features, non_pad_mask, params,
                             kernel_size=KSIZE, dilation=DIL,
                             include_zero_lag=ZERO_LAG)
    out = jax.block_until_ready(out)

    ref = cont_conv1d_reference(times, features, non_pad_mask, params,
                                kernel_size=KSIZE, dilation=DIL,
                                include_zero_lag=ZERO_LAG)
    # Slightly looser tolerance than the all-f32 v2: MXU operands are now bf16
    # (f32 accumulation), which introduces ~1% relative error pre-BatchNorm.
    np.testing.assert_allclose(np.asarray(out), np.asarray(ref),
                               rtol=4e-2, atol=4e-2)
    print("KERNEL_OK")
</pallas_src>

<mosaic_0001>
module attributes {stable_mosaic.version = 11 : i64} {
  func.func @_cont_conv_kernel(%arg0: i32, %arg1: memref<1x1x19xf32, #tpu.memory_space<vmem>>, %arg2: memref<1x1x19xf32, #tpu.memory_space<vmem>>, %arg3: memref<1x8x19xf32, #tpu.memory_space<vmem>>, %arg4: memref<8x1xf32, #tpu.memory_space<vmem>>, %arg5: memref<8x1xf32, #tpu.memory_space<vmem>>, %arg6: memref<16x8xbf16, #tpu.memory_space<vmem>>, %arg7: memref<16x1xf32, #tpu.memory_space<vmem>>, %arg8: memref<64x16xbf16, #tpu.memory_space<vmem>>, %arg9: memref<64x1xf32, #tpu.memory_space<vmem>>, %arg10: memref<8x8xbf16, #tpu.memory_space<vmem>>, %arg11: memref<8x1xf32, #tpu.memory_space<vmem>>, %arg12: memref<1x8x16xf32, #tpu.memory_space<vmem>>) attributes {dimension_semantics = [#tpu.dimension_semantics<parallel>], iteration_bounds = array<i64: 2>, scalar_prefetch = 0 : i64, scratch_operands = 0 : i64, tpu.core_type = #tpu.core_type<tc>, window_params = [{transform_indices = @transform_0, window_bounds = array<i64: 1, 1, 19>}, {transform_indices = @transform_1, window_bounds = array<i64: 1, 1, 19>}, {transform_indices = @transform_2, window_bounds = array<i64: 1, 8, 19>}, {pipeline_mode = #tpu.pipeline_mode<synchronous>, transform_indices = @transform_3, window_bounds = array<i64: 8, 1>}, {pipeline_mode = #tpu.pipeline_mode<synchronous>, transform_indices = @transform_4, window_bounds = array<i64: 8, 1>}, {pipeline_mode = #tpu.pipeline_mode<synchronous>, transform_indices = @transform_5, window_bounds = array<i64: 16, 8>}, {pipeline_mode = #tpu.pipeline_mode<synchronous>, transform_indices = @transform_6, window_bounds = array<i64: 16, 1>}, {pipeline_mode = #tpu.pipeline_mode<synchronous>, transform_indices = @transform_7, window_bounds = array<i64: 64, 16>}, {pipeline_mode = #tpu.pipeline_mode<synchronous>, transform_indices = @transform_8, window_bounds = array<i64: 64, 1>}, {pipeline_mode = #tpu.pipeline_mode<synchronous>, transform_indices = @transform_9, window_bounds = array<i64: 8, 8>}, {pipeline_mode = #tpu.pipeline_mode<synchronous>, transform_indices = @transform_10, window_bounds = array<i64: 8, 1>}, {transform_indices = @transform_11, window_bounds = array<i64: 1, 8, 16>}]} {
    %c0 = arith.constant 0 : index
    %c0_0 = arith.constant 0 : index
    %c0_1 = arith.constant 0 : index
    %0 = vector.load %arg1[%c0, %c0_0, %c0_1] : memref<1x1x19xf32, #tpu.memory_space<vmem>>, vector<1x1x19xf32>
    %1 = vector.shape_cast %0 : vector<1x1x19xf32> to vector<1x19xf32>
    %c0_2 = arith.constant 0 : index
    %c0_3 = arith.constant 0 : index
    %c0_4 = arith.constant 0 : index
    %2 = vector.load %arg2[%c0_2, %c0_3, %c0_4] : memref<1x1x19xf32, #tpu.memory_space<vmem>>, vector<1x1x19xf32>
    %3 = vector.shape_cast %2 : vector<1x1x19xf32> to vector<1x19xf32>
    %c0_5 = arith.constant 0 : index
    %c0_6 = arith.constant 0 : index
    %c0_7 = arith.constant 0 : index
    %4 = vector.load %arg3[%c0_5, %c0_6, %c0_7] : memref<1x8x19xf32, #tpu.memory_space<vmem>>, vector<1x8x19xf32>
    %5 = vector.shape_cast %4 : vector<1x8x19xf32> to vector<8x19xf32>
    %6 = vector.extract_strided_slice %1 {offsets = [0, 3], sizes = [1, 16], strides = [1, 1]} : vector<1x19xf32> to vector<1x16xf32>
    %7 = vector.extract_strided_slice %3 {offsets = [0, 3], sizes = [1, 16], strides = [1, 1]} : vector<1x19xf32> to vector<1x16xf32>
    %8 = vector.extract_strided_slice %5 {offsets = [0, 3], sizes = [8, 16], strides = [1, 1]} : vector<8x19xf32> to vector<8x16xf32>
    %c0_8 = arith.constant 0 : index
    %c0_9 = arith.constant 0 : index
    %9 = vector.load %arg4[%c0_8, %c0_9] : memref<8x1xf32, #tpu.memory_space<vmem>>, vector<8x1xf32>
    %c0_10 = arith.constant 0 : index
    %c0_11 = arith.constant 0 : index
    %10 = vector.load %arg5[%c0_10, %c0_11] : memref<8x1xf32, #tpu.memory_space<vmem>>, vector<8x1xf32>
    %c0_12 = arith.constant 0 : index
    %c0_13 = arith.constant 0 : index
    %11 = vector.load %arg6[%c0_12, %c0_13] : memref<16x8xbf16, #tpu.memory_space<vmem>>, vector<16x8xbf16>
    %c0_14 = arith.constant 0 : index
    %c0_15 = arith.constant 0 : index
    %12 = vector.load %arg7[%c0_14, %c0_15] : memref<16x1xf32, #tpu.memory_space<vmem>>, vector<16x1xf32>
    %c0_16 = arith.constant 0 : index
    %c0_17 = arith.constant 0 : index
    %13 = vector.load %arg8[%c0_16, %c0_17] : memref<64x16xbf16, #tpu.memory_space<vmem>>, vector<64x16xbf16>
    %c0_18 = arith.constant 0 : index
    %c0_19 = arith.constant 0 : index
    %14 = vector.load %arg9[%c0_18, %c0_19] : memref<64x1xf32, #tpu.memory_space<vmem>>, vector<64x1xf32>
    %cst = arith.constant 0.000000e+00 : f32
    %15 = vector.broadcast %cst : f32 to vector<8x16xf32>
    %16 = vector.extract_strided_slice %1 {offsets = [0, 0], sizes = [1, 16], strides = [1, 1]} : vector<1x19xf32> to vector<1x16xf32>
    %17 = vector.extract_strided_slice %3 {offsets = [0, 0], sizes = [1, 16], strides = [1, 1]} : vector<1x19xf32> to vector<1x16xf32>
    %18 = vector.extract_strided_slice %5 {offsets = [0, 0], sizes = [8, 16], strides = [1, 1]} : vector<8x19xf32> to vector<8x16xf32>
    %19 = arith.mulf %17, %7 : vector<1x16xf32>
    %20 = arith.subf %6, %16 : vector<1x16xf32>
    %21 = arith.mulf %20, %19 : vector<1x16xf32>
    %22 = vector.broadcast %19 : vector<1x16xf32> to vector<8x16xf32>
    %23 = arith.mulf %18, %22 : vector<8x16xf32>
    %24 = vector.broadcast %21 : vector<1x16xf32> to vector<8x16xf32>
    %25 = vector.broadcast %9 : vector<8x1xf32> to vector<8x16xf32>
    %26 = arith.mulf %24, %25 : vector<8x16xf32>
    %27 = vector.broadcast %10 : vector<8x1xf32> to vector<8x16xf32>
    %28 = arith.addf %26, %27 : vector<8x16xf32>
    %29 = math.sin %28 : vector<8x16xf32>
    %30 = arith.truncf %29 : vector<8x16xf32> to vector<8x16xbf16>
    %cst_20 = arith.constant dense<0.000000e+00> : vector<16x16xf32>
    %31 = tpu.matmul %11, %30, %cst_20 {dimension_numbers = #tpu.dot_dimension_numbers<[1], [0], [0], [1], [0, 0, 1, 1], [], []>} : vector<16x8xbf16>, vector<8x16xbf16>, vector<16x16xf32> -> vector<16x16xf32>
    %32 = vector.broadcast %12 : vector<16x1xf32> to vector<16x16xf32>
    %33 = arith.addf %31, %32 : vector<16x16xf32>
    %cst_21 = arith.constant 0.000000e+00 : f32
    %34 = vector.broadcast %cst_21 : f32 to vector<16x16xf32>
    %35 = arith.cmpf oge, %33, %34 : vector<16x16xf32>
    %cst_22 = arith.constant 1.000000e-01 : f32
    %36 = vector.broadcast %cst_22 : f32 to vector<16x16xf32>
    %37 = arith.mulf %36, %33 : vector<16x16xf32>
    %38 = arith.select %35, %33, %37 : vector<16x16xi1>, vector<16x16xf32>
    %39 = arith.truncf %38 : vector<16x16xf32> to vector<16x16xbf16>
    %cst_23 = arith.constant dense<0.000000e+00> : vector<64x16xf32>
    %40 = tpu.matmul %13, %39, %cst_23 {dimension_numbers = #tpu.dot_dimension_numbers<[1], [0], [0], [1], [0, 0, 1, 1], [], []>} : vector<64x16xbf16>, vector<16x16xbf16>, vector<64x16xf32> -> vector<64x16xf32>
    %41 = vector.broadcast %14 : vector<64x1xf32> to vector<64x16xf32>
    %42 = arith.addf %40, %41 : vector<64x16xf32>
    %43 = vector.shape_cast %42 : vector<64x16xf32> to vector<8x8x16xf32>
    %44 = vector.shape_cast %23 : vector<8x16xf32> to vector<8x1x16xf32>
    %45 = vector.broadcast %44 : vector<8x1x16xf32> to vector<8x8x16xf32>
    %46 = arith.mulf %45, %43 : vector<8x8x16xf32>
    %cst_24 = arith.constant dense<0.000000e+00> : vector<8x16xf32>
    %47 = vector.multi_reduction <add>, %46, %cst_24 [0] : vector<8x8x16xf32> to vector<8x16xf32>
    %48 = arith.addf %15, %47 : vector<8x16xf32>
    %49 = vector.extract_strided_slice %1 {offsets = [0, 1], sizes = [1, 16], strides = [1, 1]} : vector<1x19xf32> to vector<1x16xf32>
    %50 = vector.extract_strided_slice %3 {offsets = [0, 1], sizes = [1, 16], strides = [1, 1]} : vector<1x19xf32> to vector<1x16xf32>
    %51 = vector.extract_strided_slice %5 {offsets = [0, 1], sizes = [8, 16], strides = [1, 1]} : vector<8x19xf32> to vector<8x16xf32>
    %52 = arith.mulf %50, %7 : vector<1x16xf32>
    %53 = arith.subf %6, %49 : vector<1x16xf32>
    %54 = arith.mulf %53, %52 : vector<1x16xf32>
    %55 = vector.broadcast %52 : vector<1x16xf32> to vector<8x16xf32>
    %56 = arith.mulf %51, %55 : vector<8x16xf32>
    %57 = vector.broadcast %54 : vector<1x16xf32> to vector<8x16xf32>
    %58 = vector.broadcast %9 : vector<8x1xf32> to vector<8x16xf32>
    %59 = arith.mulf %57, %58 : vector<8x16xf32>
    %60 = vector.broadcast %10 : vector<8x1xf32> to vector<8x16xf32>
    %61 = arith.addf %59, %60 : vector<8x16xf32>
    %62 = math.sin %61 : vector<8x16xf32>
    %63 = arith.truncf %62 : vector<8x16xf32> to vector<8x16xbf16>
    %cst_25 = arith.constant dense<0.000000e+00> : vector<16x16xf32>
    %64 = tpu.matmul %11, %63, %cst_25 {dimension_numbers = #tpu.dot_dimension_numbers<[1], [0], [0], [1], [0, 0, 1, 1], [], []>} : vector<16x8xbf16>, vector<8x16xbf16>, vector<16x16xf32> -> vector<16x16xf32>
    %65 = vector.broadcast %12 : vector<16x1xf32> to vector<16x16xf32>
    %66 = arith.addf %64, %65 : vector<16x16xf32>
    %cst_26 = arith.constant 0.000000e+00 : f32
    %67 = vector.broadcast %cst_26 : f32 to vector<16x16xf32>
    %68 = arith.cmpf oge, %66, %67 : vector<16x16xf32>
    %cst_27 = arith.constant 1.000000e-01 : f32
    %69 = vector.broadcast %cst_27 : f32 to vector<16x16xf32>
    %70 = arith.mulf %69, %66 : vector<16x16xf32>
    %71 = arith.select %68, %66, %70 : vector<16x16xi1>, vector<16x16xf32>
    %72 = arith.truncf %71 : vector<16x16xf32> to vector<16x16xbf16>
    %cst_28 = arith.constant dense<0.000000e+00> : vector<64x16xf32>
    %73 = tpu.matmul %13, %72, %cst_28 {dimension_numbers = #tpu.dot_dimension_numbers<[1], [0], [0], [1], [0, 0, 1, 1], [], []>} : vector<64x16xbf16>, vector<16x16xbf16>, vector<64x16xf32> -> vector<64x16xf32>
    %74 = vector.broadcast %14 : vector<64x1xf32> to vector<64x16xf32>
    %75 = arith.addf %73, %74 : vector<64x16xf32>
    %76 = vector.shape_cast %75 : vector<64x16xf32> to vector<8x8x16xf32>
    %77 = vector.shape_cast %56 : vector<8x16xf32> to vector<8x1x16xf32>
    %78 = vector.broadcast %77 : vector<8x1x16xf32> to vector<8x8x16xf32>
    %79 = arith.mulf %78, %76 : vector<8x8x16xf32>
    %cst_29 = arith.constant dense<0.000000e+00> : vector<8x16xf32>
    %80 = vector.multi_reduction <add>, %79, %cst_29 [0] : vector<8x8x16xf32> to vector<8x16xf32>
    %81 = arith.addf %48, %80 : vector<8x16xf32>
    %82 = vector.extract_strided_slice %1 {offsets = [0, 2], sizes = [1, 16], strides = [1, 1]} : vector<1x19xf32> to vector<1x16xf32>
    %83 = vector.extract_strided_slice %3 {offsets = [0, 2], sizes = [1, 16], strides = [1, 1]} : vector<1x19xf32> to vector<1x16xf32>
    %84 = vector.extract_strided_slice %5 {offsets = [0, 2], sizes = [8, 16], strides = [1, 1]} : vector<8x19xf32> to vector<8x16xf32>
    %85 = arith.mulf %83, %7 : vector<1x16xf32>
    %86 = arith.subf %6, %82 : vector<1x16xf32>
    %87 = arith.mulf %86, %85 : vector<1x16xf32>
    %88 = vector.broadcast %85 : vector<1x16xf32> to vector<8x16xf32>
    %89 = arith.mulf %84, %88 : vector<8x16xf32>
    %90 = vector.broadcast %87 : vector<1x16xf32> to vector<8x16xf32>
    %91 = vector.broadcast %9 : vector<8x1xf32> to vector<8x16xf32>
    %92 = arith.mulf %90, %91 : vector<8x16xf32>
    %93 = vector.broadcast %10 : vector<8x1xf32> to vector<8x16xf32>
    %94 = arith.addf %92, %93 : vector<8x16xf32>
    %95 = math.sin %94 : vector<8x16xf32>
    %96 = arith.truncf %95 : vector<8x16xf32> to vector<8x16xbf16>
    %cst_30 = arith.constant dense<0.000000e+00> : vector<16x16xf32>
    %97 = tpu.matmul %11, %96, %cst_30 {dimension_numbers = #tpu.dot_dimension_numbers<[1], [0], [0], [1], [0, 0, 1, 1], [], []>} : vector<16x8xbf16>, vector<8x16xbf16>, vector<16x16xf32> -> vector<16x16xf32>
    %98 = vector.broadcast %12 : vector<16x1xf32> to vector<16x16xf32>
    %99 = arith.addf %97, %98 : vector<16x16xf32>
    %cst_31 = arith.constant 0.000000e+00 : f32
    %100 = vector.broadcast %cst_31 : f32 to vector<16x16xf32>
    %101 = arith.cmpf oge, %99, %100 : vector<16x16xf32>
    %cst_32 = arith.constant 1.000000e-01 : f32
    %102 = vector.broadcast %cst_32 : f32 to vector<16x16xf32>
    %103 = arith.mulf %102, %99 : vector<16x16xf32>
    %104 = arith.select %101, %99, %103 : vector<16x16xi1>, vector<16x16xf32>
    %105 = arith.truncf %104 : vector<16x16xf32> to vector<16x16xbf16>
    %cst_33 = arith.constant dense<0.000000e+00> : vector<64x16xf32>
    %106 = tpu.matmul %13, %105, %cst_33 {dimension_numbers = #tpu.dot_dimension_numbers<[1], [0], [0], [1], [0, 0, 1, 1], [], []>} : vector<64x16xbf16>, vector<16x16xbf16>, vector<64x16xf32> -> vector<64x16xf32>
    %107 = vector.broadcast %14 : vector<64x1xf32> to vector<64x16xf32>
    %108 = arith.addf %106, %107 : vector<64x16xf32>
    %109 = vector.shape_cast %108 : vector<64x16xf32> to vector<8x8x16xf32>
    %110 = vector.shape_cast %89 : vector<8x16xf32> to vector<8x1x16xf32>
    %111 = vector.broadcast %110 : vector<8x1x16xf32> to vector<8x8x16xf32>
    %112 = arith.mulf %111, %109 : vector<8x8x16xf32>
    %cst_34 = arith.constant dense<0.000000e+00> : vector<8x16xf32>
    %113 = vector.multi_reduction <add>, %112, %cst_34 [0] : vector<8x8x16xf32> to vector<8x16xf32>
    %114 = arith.addf %81, %113 : vector<8x16xf32>
    %c0_35 = arith.constant 0 : index
    %c0_36 = arith.constant 0 : index
    %115 = vector.load %arg10[%c0_35, %c0_36] : memref<8x8xbf16, #tpu.memory_space<vmem>>, vector<8x8xbf16>
    %116 = arith.truncf %8 : vector<8x16xf32> to vector<8x16xbf16>
    %cst_37 = arith.constant dense<0.000000e+00> : vector<8x16xf32>
    %117 = tpu.matmul %115, %116, %cst_37 {dimension_numbers = #tpu.dot_dimension_numbers<[1], [0], [0], [1], [0, 0, 1, 1], [], []>} : vector<8x8xbf16>, vector<8x16xbf16>, vector<8x16xf32> -> vector<8x16xf32>
    %c0_38 = arith.constant 0 : index
    %c0_39 = arith.constant 0 : index
    %118 = vector.load %arg11[%c0_38, %c0_39] : memref<8x1xf32, #tpu.memory_space<vmem>>, vector<8x1xf32>
    %119 = vector.broadcast %118 : vector<8x1xf32> to vector<8x16xf32>
    %120 = arith.addf %117, %119 : vector<8x16xf32>
    %121 = arith.addf %114, %120 : vector<8x16xf32>
    %c0_40 = arith.constant 0 : index
    %c0_41 = arith.constant 0 : index
    %c0_42 = arith.constant 0 : index
    %122 = vector.load %arg12[%c0_40, %c0_41, %c0_42] : memref<1x8x16xf32, #tpu.memory_space<vmem>>, vector<1x8x16xf32>
    %123 = vector.shape_cast %122 : vector<1x8x16xf32> to vector<8x16xf32>
    %124 = vector.shape_cast %121 : vector<8x16xf32> to vector<1x8x16xf32>
    tpu.vector_store %arg12[%c0_40, %c0_41, %c0_42], %124 {strides = array<i32>} : memref<1x8x16xf32, #tpu.memory_space<vmem>>, vector<1x8x16xf32>,
    return
  }
  func.func @transform_0(%arg0: i32) -> (i32, i32, i32) {
    %c0_i32 = arith.constant 0 : i32
    %c0_i32_0 = arith.constant 0 : i32
    %c0_i32_1 = arith.constant 0 : i32
    return %arg0, %c0_i32, %c0_i32_0 : i32, i32, i32
  }
  func.func @transform_1(%arg0: i32) -> (i32, i32, i32) {
    %c0_i32 = arith.constant 0 : i32
    %c0_i32_0 = arith.constant 0 : i32
    %c0_i32_1 = arith.constant 0 : i32
    return %arg0, %c0_i32, %c0_i32_0 : i32, i32, i32
  }
  func.func @transform_2(%arg0: i32) -> (i32, i32, i32) {
    %c0_i32 = arith.constant 0 : i32
    %c0_i32_0 = arith.constant 0 : i32
    %c0_i32_1 = arith.constant 0 : i32
    return %arg0, %c0_i32, %c0_i32_0 : i32, i32, i32
  }
  func.func @transform_3(%arg0: i32) -> (i32, i32) {
    %c0_i32 = arith.constant 0 : i32
    %c0_i32_0 = arith.constant 0 : i32
    %c0_i32_1 = arith.constant 0 : i32
    return %c0_i32, %c0_i32_0 : i32, i32
  }
  func.func @transform_4(%arg0: i32) -> (i32, i32) {
    %c0_i32 = arith.constant 0 : i32
    %c0_i32_0 = arith.constant 0 : i32
    %c0_i32_1 = arith.constant 0 : i32
    return %c0_i32, %c0_i32_0 : i32, i32
  }
  func.func @transform_5(%arg0: i32) -> (i32, i32) {
    %c0_i32 = arith.constant 0 : i32
    %c0_i32_0 = arith.constant 0 : i32
    %c0_i32_1 = arith.constant 0 : i32
    return %c0_i32, %c0_i32_0 : i32, i32
  }
  func.func @transform_6(%arg0: i32) -> (i32, i32) {
    %c0_i32 = arith.constant 0 : i32
    %c0_i32_0 = arith.constant 0 : i32
    %c0_i32_1 = arith.constant 0 : i32
    return %c0_i32, %c0_i32_0 : i32, i32
  }
  func.func @transform_7(%arg0: i32) -> (i32, i32) {
    %c0_i32 = arith.constant 0 : i32
    %c0_i32_0 = arith.constant 0 : i32
    %c0_i32_1 = arith.constant 0 : i32
    return %c0_i32, %c0_i32_0 : i32, i32
  }
  func.func @transform_8(%arg0: i32) -> (i32, i32) {
    %c0_i32 = arith.constant 0 : i32
    %c0_i32_0 = arith.constant 0 : i32
    %c0_i32_1 = arith.constant 0 : i32
    return %c0_i32, %c0_i32_0 : i32, i32
  }
  func.func @transform_9(%arg0: i32) -> (i32, i32) {
    %c0_i32 = arith.constant 0 : i32
    %c0_i32_0 = arith.constant 0 : i32
    %c0_i32_1 = arith.constant 0 : i32
    return %c0_i32, %c0_i32_0 : i32, i32
  }
  func.func @transform_10(%arg0: i32) -> (i32, i32) {
    %c0_i32 = arith.constant 0 : i32
    %c0_i32_0 = arith.constant 0 : i32
    %c0_i32_1 = arith.constant 0 : i32
    return %c0_i32, %c0_i32_0 : i32, i32
  }
  func.func @transform_11(%arg0: i32) -> (i32, i32, i32) {
    %c0_i32 = arith.constant 0 : i32
    %c0_i32_0 = arith.constant 0 : i32
    %c0_i32_1 = arith.constant 0 : i32
    return %arg0, %c0_i32, %c0_i32_0 : i32, i32, i32
  }
}

</mosaic_0001>

<llo_original>
// kernel: tpu_custom_call.1
$region0: #{tpu_custom_call.1}
  #allocation0 [shape = 'u32[]', space=smem, size = 0x4, offset = 0x4, fixed_abs, tag = 'smem constant byte address 0x4 - core index']
  #allocation1 [shape = 'u32[144,128]{1,0:T(1,128)}', space=vmem, size = 0x12000, scoped, tag = 'internal scratch']
  %s0 = inlined_call_operand.vmem [shape: f32[2,1,19], index: 0, kind: input, shape index: {}]
  %s1 = inlined_call_operand.vmem [shape: f32[2,1,19], index: 1, kind: input, shape index: {}]
  %s2 = inlined_call_operand.vmem [shape: f32[2,8,19], index: 2, kind: input, shape index: {}]
  %s3 = inlined_call_operand.vmem [shape: f32[8,1], index: 3, kind: input, shape index: {}]
  %s4 = inlined_call_operand.vmem [shape: f32[8,1], index: 4, kind: input, shape index: {}]
  %s5 = inlined_call_operand.vmem [shape: bf16[16,8], index: 5, kind: input, shape index: {}]
  %s6 = inlined_call_operand.vmem [shape: f32[16,1], index: 6, kind: input, shape index: {}]
  %s7 = inlined_call_operand.vmem [shape: bf16[64,16], index: 7, kind: input, shape index: {}]
  %s8 = inlined_call_operand.vmem [shape: f32[64,1], index: 8, kind: input, shape index: {}]
  %s9 = inlined_call_operand.vmem [shape: bf16[8,8], index: 9, kind: input, shape index: {}]
  %s10 = inlined_call_operand.vmem [shape: f32[8,1], index: 10, kind: input, shape index: {}]
  %s11 = inlined_call_operand.hbm [shape: f32[2,8,16], index: 11, kind: output, shape index: {}]
  %s12 = sld [smem:[#allocation0]]
  $region77: #{tpu_custom_call.1} parent=0
    _
  %s14 = ssub.s32 1, %s12
  %s15 = scalar_select 0, %s14, %s12
  $region1: #{tpu_custom_call.1} parent=0
    #allocation2 [shape = 'u8[8192]{0}', space=vmem, size = 0x2000, scoped, tag = 'output window, operand 0']
    #allocation3 [shape = 's32[2]{0}', space=sflag, size = 0x8, scoped, tag = 'scoped memory for tpu_custom_call.1']
    %16 = vsyncpa [#allocation3], 0
    %s17 = scalar_lea.sflag [#allocation3], 1
    %18 = vsyncpa %s17, 0
    loop: start=0, step=1, limit=4
    $region2: #{tpu_custom_call.1} parent=1 // loop_pre_header
      _
    $region3: #{tpu_custom_call.1} parent=1 // loop_header
      %s20 = sphi 0, %s24
      %p21 = scmp.ge.s32.totalorder %s20, 4
      %s30 = sphi 0, %s32
      %s33 = sphi 0, %s30
      %s34 = sphi 0, %s33
      %s50 = sphi 0, %s34
      %s56 = sphi 0, %s58
      %s59 = sphi 0, %s56
      %s60 = sphi 0, %s59
      %s76 = sphi 0, %s60
      %s82 = sphi 0, %s84
      %s85 = sphi 0, %s82
      %s86 = sphi 0, %s85
      %s102 = sphi 0, %s86
      %s106 = sphi 0, %s106
      %s108 = sphi 0, %s106
      %s109 = sphi 0, %s108
      %s123 = sphi 0, %s109
      %s127 = sphi 0, %s127
      %s129 = sphi 0, %s127
      %s130 = sphi 0, %s129
      %s144 = sphi 0, %s130
      %s148 = sphi 0, %s148
      %s150 = sphi 0, %s148
      %s151 = sphi 0, %s150
      %s165 = sphi 0, %s151
      %s169 = sphi 0, %s169
      %s171 = sphi 0, %s169
      %s172 = sphi 0, %s171
      %s186 = sphi 0, %s172
      %s190 = sphi 0, %s190
      %s192 = sphi 0, %s190
      %s193 = sphi 0, %s192
      %s207 = sphi 0, %s193
      %s211 = sphi 0, %s211
      %s213 = sphi 0, %s211
      %s214 = sphi 0, %s213
      %s228 = sphi 0, %s214
      %s232 = sphi 0, %s232
      %s234 = sphi 0, %s232
      %s235 = sphi 0, %s234
      %s249 = sphi 0, %s235
      %s253 = sphi 0, %s253
      %s255 = sphi 0, %s253
      %s256 = sphi 0, %s255
      %s270 = sphi 0, %s256
      %s276 = sphi 0, %s278
      %s279 = sphi 0, %s276
      %s280 = sphi 0, %s279
      %s296 = sphi 0, %s280
    $region4: #{tpu_custom_call.1} parent=1 // loop_header_branch
      %23 = sbr.rel (%p21) target = $region8
    $region5: #{tpu_custom_call.1} parent=1 // loop_body
      %s25 = ssub.s32 %s20, 1
      %s26 = ssub.s32 %s20, 2
      %s27 = sadd.s32 %s20, 1
      %s28 = ssub.s32 %s20, %s27
      %p29 = scmp.eq.s32.totalorder %s28, 0
      %s31 = sadd.s32 %s30, 1
      %s32 = scalar_select %p29, %s30, %s31
      %p35 = pneg %p29
      %p36 = scmp.eq.s32.totalorder %s20, 1
      %p37 = por %p35, %p36
      %p38 = scmp.ne.s32.totalorder %s30, %s33
      %p39 = scmp.eq.s32.totalorder %s20, 0
      %p40 = por %p38, %p39
      %p41 = scmp.ne.s32.totalorder %s30, %s33
      %p42 = scmp.eq.s32.totalorder %s25, 1
      %p43 = por %p41, %p42
      %p44 = scmp.ne.s32.totalorder %s33, %s34
      %p45 = scmp.eq.s32.totalorder %s25, 0
      %p46 = por %p44, %p45
      %p47 = scmp.ne.s32.totalorder %s33, %s34
      %p48 = scmp.eq.s32.totalorder %s26, 1
      %p49 = por %p47, %p48
      %p51 = scmp.ne.s32.totalorder %s34, %s50
      %p52 = scmp.eq.s32.totalorder %s26, 0
      %p53 = por %p51, %p52
      %s54 = ssub.s32 %s20, %s27
      %p55 = scmp.eq.s32.totalorder %s54, 0
      %s57 = sadd.s32 %s56, 1
      %s58 = scalar_select %p55, %s56, %s57
      %p61 = pneg %p55
      %p62 = scmp.eq.s32.totalorder %s20, 1
      %p63 = por %p61, %p62
      %p64 = scmp.ne.s32.totalorder %s56, %s59
      %p65 = scmp.eq.s32.totalorder %s20, 0
      %p66 = por %p64, %p65
      %p67 = scmp.ne.s32.totalorder %s56, %s59
      %p68 = scmp.eq.s32.totalorder %s25, 1
      %p69 = por %p67, %p68
      %p70 = scmp.ne.s32.totalorder %s59, %s60
      %p71 = scmp.eq.s32.totalorder %s25, 0
      %p72 = por %p70, %p71
      %p73 = scmp.ne.s32.totalorder %s59, %s60
      %p74 = scmp.eq.s32.totalorder %s26, 1
      %p75 = por %p73, %p74
      %p77 = scmp.ne.s32.totalorder %s60, %s76
      %p78 = scmp.eq.s32.totalorder %s26, 0
      %p79 = por %p77, %p78
      %s80 = ssub.s32 %s20, %s27
      %p81 = scmp.eq.s32.totalorder %s80, 0
      %s83 = sadd.s32 %s82, 1
      %s84 = scalar_select %p81, %s82, %s83
      %p87 = pneg %p81
      %p88 = scmp.eq.s32.totalorder %s20, 1
      %p89 = por %p87, %p88
      %p90 = scmp.ne.s32.totalorder %s82, %s85
      %p91 = scmp.eq.s32.totalorder %s20, 0
      %p92 = por %p90, %p91
      %p93 = scmp.ne.s32.totalorder %s82, %s85
      %p94 = scmp.eq.s32.totalorder %s25, 1
      %p95 = por %p93, %p94
      %p96 = scmp.ne.s32.totalorder %s85, %s86
      %p97 = scmp.eq.s32.totalorder %s25, 0
      %p98 = por %p96, %p97
      %p99 = scmp.ne.s32.totalorder %s85, %s86
      %p100 = scmp.eq.s32.totalorder %s26, 1
      %p101 = por %p99, %p100
      %p103 = scmp.ne.s32.totalorder %s86, %s102
      %p104 = scmp.eq.s32.totalorder %s26, 0
      %p105 = por %p103, %p104
      %s107 = sadd.s32 %s106, 1
      %p110 = scmp.eq.s32.totalorder %s20, 1
      %p111 = scmp.ne.s32.totalorder %s106, %s108
      %p112 = scmp.eq.s32.totalorder %s20, 0
      %p113 = por %p111, %p112
      %p114 = scmp.ne.s32.totalorder %s106, %s108
      %p115 = scmp.eq.s32.totalorder %s25, 1
      %p116 = por %p114, %p115
      %p117 = scmp.ne.s32.totalorder %s108, %s109
      %p118 = scmp.eq.s32.totalorder %s25, 0
      %p119 = por %p117, %p118
      %p120 = scmp.ne.s32.totalorder %s108, %s109
      %p121 = scmp.eq.s32.totalorder %s26, 1
      %p122 = por %p120, %p121
      %p124 = scmp.ne.s32.totalorder %s109, %s123
      %p125 = scmp.eq.s32.totalorder %s26, 0
      %p126 = por %p124, %p125
      %s128 = sadd.s32 %s127, 1
      %p131 = scmp.eq.s32.totalorder %s20, 1
      %p132 = scmp.ne.s32.totalorder %s127, %s129
      %p133 = scmp.eq.s32.totalorder %s20, 0
      %p134 = por %p132, %p133
      %p135 = scmp.ne.s32.totalorder %s127, %s129
      %p136 = scmp.eq.s32.totalorder %s25, 1
      %p137 = por %p135, %p136
      %p138 = scmp.ne.s32.totalorder %s129, %s130
      %p139 = scmp.eq.s32.totalorder %s25, 0
      %p140 = por %p138, %p139
      %p141 = scmp.ne.s32.totalorder %s129, %s130
      %p142 = scmp.eq.s32.totalorder %s26, 1
      %p143 = por %p141, %p142
      %p145 = scmp.ne.s32.totalorder %s130, %s144
      %p146 = scmp.eq.s32.totalorder %s26, 0
      %p147 = por %p145, %p146
      %s149 = sadd.s32 %s148, 1
      %p152 = scmp.eq.s32.totalorder %s20, 1
      %p153 = scmp.ne.s32.totalorder %s148, %s150
      %p154 = scmp.eq.s32.totalorder %s20, 0
      %p155 = por %p153, %p154
      %p156 = scmp.ne.s32.totalorder %s148, %s150
      %p157 = scmp.eq.s32.totalorder %s25, 1
      %p158 = por %p156, %p157
      %p159 = scmp.ne.s32.totalorder %s150, %s151
      %p160 = scmp.eq.s32.totalorder %s25, 0
      %p161 = por %p159, %p160
      %p162 = scmp.ne.s32.totalorder %s150, %s151
      %p163 = scmp.eq.s32.totalorder %s26, 1
      %p164 = por %p162, %p163
      %p166 = scmp.ne.s32.totalorder %s151, %s165
      %p167 = scmp.eq.s32.totalorder %s26, 0
      %p168 = por %p166, %p167
      %s170 = sadd.s32 %s169, 1
      %p173 = scmp.eq.s32.totalorder %s20, 1
      %p174 = scmp.ne.s32.totalorder %s169, %s171
      %p175 = scmp.eq.s32.totalorder %s20, 0
      %p176 = por %p174, %p175
      %p177 = scmp.ne.s32.totalorder %s169, %s171
      %p178 = scmp.eq.s32.totalorder %s25, 1
      %p179 = por %p177, %p178
      %p180 = scmp.ne.s32.totalorder %s171, %s172
      %p181 = scmp.eq.s32.totalorder %s25, 0
      %p182 = por %p180, %p181
      %p183 = scmp.ne.s32.totalorder %s171, %s172
      %p184 = scmp.eq.s32.totalorder %s26, 1
      %p185 = por %p183, %p184
      %p187 = scmp.ne.s32.totalorder %s172, %s186
      %p188 = scmp.eq.s32.totalorder %s26, 0
      %p189 = por %p187, %p188
      %s191 = sadd.s32 %s190, 1
      %p194 = scmp.eq.s32.totalorder %s20, 1
      %p195 = scmp.ne.s32.totalorder %s190, %s192
      %p196 = scmp.eq.s32.totalorder %s20, 0
      %p197 = por %p195, %p196
      %p198 = scmp.ne.s32.totalorder %s190, %s192
      %p199 = scmp.eq.s32.totalorder %s25, 1
      %p200 = por %p198, %p199
      %p201 = scmp.ne.s32.totalorder %s192, %s193
      %p202 = scmp.eq.s32.totalorder %s25, 0
      %p203 = por %p201, %p202
      %p204 = scmp.ne.s32.totalorder %s192, %s193
      %p205 = scmp.eq.s32.totalorder %s26, 1
      %p206 = por %p204, %p205
      %p208 = scmp.ne.s32.totalorder %s193, %s207
      %p209 = scmp.eq.s32.totalorder %s26, 0
      %p210 = por %p208, %p209
      %s212 = sadd.s32 %s211, 1
      %p215 = scmp.eq.s32.totalorder %s20, 1
      %p216 = scmp.ne.s32.totalorder %s211, %s213
      %p217 = scmp.eq.s32.totalorder %s20, 0
      %p218 = por %p216, %p217
      %p219 = scmp.ne.s32.totalorder %s211, %s213
      %p220 = scmp.eq.s32.totalorder %s25, 1
      %p221 = por %p219, %p220
      %p222 = scmp.ne.s32.totalorder %s213, %s214
      %p223 = scmp.eq.s32.totalorder %s25, 0
      %p224 = por %p222, %p223
      %p225 = scmp.ne.s32.totalorder %s213, %s214
      %p226 = scmp.eq.s32.totalorder %s26, 1
      %p227 = por %p225, %p226
      %p229 = scmp.ne.s32.totalorder %s214, %s228
      %p230 = scmp.eq.s32.totalorder %s26, 0
      %p231 = por %p229, %p230
      %s233 = sadd.s32 %s232, 1
      %p236 = scmp.eq.s32.totalorder %s20, 1
      %p237 = scmp.ne.s32.totalorder %s232, %s234
      %p238 = scmp.eq.s32.totalorder %s20, 0
      %p239 = por %p237, %p238
      %p240 = scmp.ne.s32.totalorder %s232, %s234
      %p241 = scmp.eq.s32.totalorder %s25, 1
      %p242 = por %p240, %p241
      %p243 = scmp.ne.s32.totalorder %s234, %s235
      %p244 = scmp.eq.s32.totalorder %s25, 0
      %p245 = por %p243, %p244
      %p246 = scmp.ne.s32.totalorder %s234, %s235
      %p247 = scmp.eq.s32.totalorder %s26, 1
      %p248 = por %p246, %p247
      %p250 = scmp.ne.s32.totalorder %s235, %s249
      %p251 = scmp.eq.s32.totalorder %s26, 0
      %p252 = por %p250, %p251
      %s254 = sadd.s32 %s253, 1
      %p257 = scmp.eq.s32.totalorder %s20, 1
      %p258 = scmp.ne.s32.totalorder %s253, %s255
      %p259 = scmp.eq.s32.totalorder %s20, 0
      %p260 = por %p258, %p259
      %p261 = scmp.ne.s32.totalorder %s253, %s255
      %p262 = scmp.eq.s32.totalorder %s25, 1
      %p263 = por %p261, %p262
      %p264 = scmp.ne.s32.totalorder %s255, %s256
      %p265 = scmp.eq.s32.totalorder %s25, 0
      %p266 = por %p264, %p265
      %p267 = scmp.ne.s32.totalorder %s255, %s256
      %p268 = scmp.eq.s32.totalorder %s26, 1
      %p269 = por %p267, %p268
      %p271 = scmp.ne.s32.totalorder %s256, %s270
      %p272 = scmp.eq.s32.totalorder %s26, 0
      %p273 = por %p271, %p272
      %s274 = ssub.s32 %s20, %s27
      %p275 = scmp.eq.s32.totalorder %s274, 0
      %s277 = sadd.s32 %s276, 1
      %s278 = scalar_select %p275, %s276, %s277
      %p281 = pneg %p275
      %p282 = scmp.eq.s32.totalorder %s20, 1
      %p283 = por %p281, %p282
      %p284 = scmp.ne.s32.totalorder %s276, %s279
      %p285 = scmp.eq.s32.totalorder %s20, 0
      %p286 = por %p284, %p285
      %p287 = scmp.ne.s32.totalorder %s276, %s279
      %p288 = scmp.eq.s32.totalorder %s25, 1
      %p289 = por %p287, %p288
      %p290 = scmp.ne.s32.totalorder %s279, %s280
      %p291 = scmp.eq.s32.totalorder %s25, 0
      %p292 = por %p290, %p291
      %p293 = scmp.ne.s32.totalorder %s279, %s280
      %p294 = scmp.eq.s32.totalorder %s26, 1
      %p295 = por %p293, %p294
      %p297 = scmp.ne.s32.totalorder %s280, %s296
      %p298 = scmp.eq.s32.totalorder %s26, 0
      %p299 = por %p297, %p298
      %p300 = scmp.le.s32.totalorder 1, %s20
      %p301 = scmp.lt.s32.totalorder %s20, 3
      %p302 = pnand %p300, %p301
      %p303 = pneg %p302
      // Predicated region
      $region9: #{tpu_custom_call.1} parent=5 // pred_check
        _
      $region10: #{tpu_custom_call.1} parent=5 // pred_check_branch
        %305 = sbr.rel (%p302) target = $region12
      $region11: #{tpu_custom_call.1} parent=5 // pred_region
        %s306 = ssub.s32 %s20, 1
        // Predicated region
        $region13: #{tpu_custom_call.1} parent=11 // pred_check
          %p307 = pneg %p119
        $region14: #{tpu_custom_call.1} parent=11 // pred_check_branch
          %309 = sbr.rel (%p307) target = $region16
        $region15: #{tpu_custom_call.1} parent=11 // pred_region
          _
        $region16: #{tpu_custom_call.1} parent=11 // pred_fallthru
          _
        // Predicated region
        $region17: #{tpu_custom_call.1} parent=11 // pred_check
          %p310 = pneg %p140
        $region18: #{tpu_custom_call.1} parent=11 // pred_check_branch
          %312 = sbr.rel (%p310) target = $region20
        $region19: #{tpu_custom_call.1} parent=11 // pred_region
          _
        $region20: #{tpu_custom_call.1} parent=11 // pred_fallthru
          _
        // Predicated region
        $region21: #{tpu_custom_call.1} parent=11 // pred_check
          %p313 = pneg %p161
        $region22: #{tpu_custom_call.1} parent=11 // pred_check_branch
          %315 = sbr.rel (%p313) target = $region24
        $region23: #{tpu_custom_call.1} parent=11 // pred_region
          _
        $region24: #{tpu_custom_call.1} parent=11 // pred_fallthru
          _
        // Predicated region
        $region25: #{tpu_custom_call.1} parent=11 // pred_check
          %p316 = pneg %p182
        $region26: #{tpu_custom_call.1} parent=11 // pred_check_branch
          %318 = sbr.rel (%p316) target = $region28
        $region27: #{tpu_custom_call.1} parent=11 // pred_region
          _
        $region28: #{tpu_custom_call.1} parent=11 // pred_fallthru
          _
        // Predicated region
        $region29: #{tpu_custom_call.1} parent=11 // pred_check
          %p319 = pneg %p203
        $region30: #{tpu_custom_call.1} parent=11 // pred_check_branch
          %321 = sbr.rel (%p319) target = $region32
        $region31: #{tpu_custom_call.1} parent=11 // pred_region
          _
        $region32: #{tpu_custom_call.1} parent=11 // pred_fallthru
          _
        // Predicated region
        $region33: #{tpu_custom_call.1} parent=11 // pred_check
          %p322 = pneg %p224
        $region34: #{tpu_custom_call.1} parent=11 // pred_check_branch
          %324 = sbr.rel (%p322) target = $region36
        $region35: #{tpu_custom_call.1} parent=11 // pred_region
          _
        $region36: #{tpu_custom_call.1} parent=11 // pred_fallthru
          _
        // Predicated region
        $region37: #{tpu_custom_call.1} parent=11 // pred_check
          %p325 = pneg %p245
        $region38: #{tpu_custom_call.1} parent=11 // pred_check_branch
          %327 = sbr.rel (%p325) target = $region40
        $region39: #{tpu_custom_call.1} parent=11 // pred_region
          _
        $region40: #{tpu_custom_call.1} parent=11 // pred_fallthru
          _
        // Predicated region
        $region41: #{tpu_custom_call.1} parent=11 // pred_check
          %p328 = pneg %p266
        $region42: #{tpu_custom_call.1} parent=11 // pred_check_branch
          %330 = sbr.rel (%p328) target = $region44
        $region43: #{tpu_custom_call.1} parent=11 // pred_region
          _
        $region44: #{tpu_custom_call.1} parent=11 // pred_fallthru
          _
      $region12: #{tpu_custom_call.1} parent=5 // pred_fallthru
        _
      %p331 = scmp.lt.s32.totalorder %s20, 2
      // Predicated region
      $region45: #{tpu_custom_call.1} parent=5 // pred_check
        %p332 = pneg %p331
      $region46: #{tpu_custom_call.1} parent=5 // pred_check_branch
        %334 = sbr.rel (%p332) target = $region48
      $region47: #{tpu_custom_call.1} parent=5 // pred_region
        // Predicated region
        $region49: #{tpu_custom_call.1} parent=47 // pred_check
          %p335 = pneg %p40
        $region50: #{tpu_custom_call.1} parent=47 // pred_check_branch
          %337 = sbr.rel (%p335) target = $region52
        $region51: #{tpu_custom_call.1} parent=47 // pred_region
          %p338 = scmp.lt.s32.totalorder %s20, 1
          %s339 = scalar_select %p338, %s20, 1
          %s340 = scalar_lea.vmem %s0, %s339
        $region52: #{tpu_custom_call.1} parent=47 // pred_fallthru
          _
        // Predicated region
        $region53: #{tpu_custom_call.1} parent=47 // pred_check
          %p341 = pneg %p66
        $region54: #{tpu_custom_call.1} parent=47 // pred_check_branch
          %343 = sbr.rel (%p341) target = $region56
        $region55: #{tpu_custom_call.1} parent=47 // pred_region
          %p344 = scmp.lt.s32.totalorder %s20, 1
          %s345 = scalar_select %p344, %s20, 1
          %s346 = scalar_lea.vmem %s1, %s345
        $region56: #{tpu_custom_call.1} parent=47 // pred_fallthru
          _
        // Predicated region
        $region57: #{tpu_custom_call.1} parent=47 // pred_check
          %p347 = pneg %p92
        $region58: #{tpu_custom_call.1} parent=47 // pred_check_branch
          %349 = sbr.rel (%p347) target = $region60
        $region59: #{tpu_custom_call.1} parent=47 // pred_region
          %p350 = scmp.lt.s32.totalorder %s20, 1
          %s351 = scalar_select %p350, %s20, 1
          %s352 = smul.addr %s351, 8
          %s353 = scalar_lea.vmem %s2, %s352
        $region60: #{tpu_custom_call.1} parent=47 // pred_fallthru
          _
      $region48: #{tpu_custom_call.1} parent=5 // pred_fallthru
        _
      %p354 = scmp.le.s32.totalorder 1, %s20
      %p355 = scmp.lt.s32.totalorder %s20, 3
      %p356 = pnand %p354, %p355
      %p357 = pneg %p356
      // Predicated region
      $region61: #{tpu_custom_call.1} parent=5 // pred_check
        _
      $region62: #{tpu_custom_call.1} parent=5 // pred_check_branch
        %359 = sbr.rel (%p356) target = $region64
      $region63: #{tpu_custom_call.1} parent=5 // pred_region
        %s360 = ssub.s32 %s20, 1
        %p361 = scmp.lt.s32.totalorder %s25, 1
        %s362 = scalar_select %p361, %s25, 1
        %s363 = scalar_lea.vmem %s0, %s362
        %p364 = pneg %p46
        %p365 = pneg %p43
        %p366 = scmp.lt.s32.totalorder %s25, 1
        %s367 = scalar_select %p366, %s25, 1
        %s368 = scalar_lea.vmem %s1, %s367
        %p369 = pneg %p72
        %p370 = pneg %p69
        %p371 = scmp.lt.s32.totalorder %s25, 1
        %s372 = scalar_select %p371, %s25, 1
        %s373 = smul.addr %s372, 8
        %s374 = scalar_lea.vmem %s2, %s373
        %p375 = pneg %p98
        %p376 = pneg %p95
        %p377 = pneg %p119
        %p378 = pneg %p116
        %p379 = pneg %p140
        %p380 = pneg %p137
        %p381 = pneg %p161
        %p382 = pneg %p158
        %p383 = pneg %p182
        %p384 = pneg %p179
        %p385 = pneg %p203
        %p386 = pneg %p200
        %p387 = pneg %p224
        %p388 = pneg %p221
        %p389 = pneg %p245
        %p390 = pneg %p242
        %p391 = pneg %p266
        %p392 = pneg %p263
        %p393 = pneg %p292
        %p394 = pneg %p289
        %s395 = sand.u32 %s279, 1
        %s396 = scalar_lea.sflag [#allocation3], %s395
        %s397 = sand.u32 %s279, 1
        %s398 = smul.addr %s397, 8
        %s399 = scalar_lea.vmem [#allocation2], %s398
        %p400 = scmp.lt.s32.totalorder %s25, 1
        %s401 = scalar_select %p400, %s25, 1
        %s402 = scalar_lea.vmem %s0, %s401
        %p403 = scmp.lt.s32.totalorder %s25, 1
        %s404 = scalar_select %p403, %s25, 1
        %s405 = scalar_lea.vmem %s1, %s404
        %p406 = scmp.lt.s32.totalorder %s25, 1
        %s407 = scalar_select %p406, %s25, 1
        %s408 = smul.addr %s407, 8
        %s409 = scalar_lea.vmem %s2, %s408
        %v411 = vld [vmem:[%s402] sm:$0x1]
        %v412 = vld [vmem:[%s405] sm:$0x1]
        %v413 = vld [vmem:[%s409] sm:$0xff]
        %v414 = vld [vmem:[%s3] sm:$0xff]
        %v415 = vld [vmem:[%s4] sm:$0xff]
        %v416 = vld [vmem:[%s5] sm:$0xf]
        %v417 = vld [vmem:[%s5 + $0x4] sm:$0xf]
        %v418 = vld [vmem:[%s6] sm:$0xff]
        %v419 = vld [vmem:[%s6 + $0x8] sm:$0xff]
        %v420 = vld [vmem:[%s7] sm:$0xf]
        %v421 = vld [vmem:[%s7 + $0x4] sm:$0xf]
        %v422 = vld [vmem:[%s7 + $0x8] sm:$0xf]
        %v423 = vld [vmem:[%s7 + $0xc] sm:$0xf]
        %v424 = vld [vmem:[%s7 + $0x10] sm:$0xf]
        %v425 = vld [vmem:[%s7 + $0x14] sm:$0xf]
        %v426 = vld [vmem:[%s7 + $0x18] sm:$0xf]
        %v427 = vld [vmem:[%s7 + $0x1c] sm:$0xf]
        %v428 = vld [vmem:[%s8] sm:$0xff]
        %v429 = vld [vmem:[%s8 + $0x8] sm:$0xff]
        %v430 = vld [vmem:[%s8 + $0x10] sm:$0xff]
        %v431 = vld [vmem:[%s8 + $0x18] sm:$0xff]
        %v432 = vld [vmem:[%s8 + $0x20] sm:$0xff]
        %v433 = vld [vmem:[%s8 + $0x28] sm:$0xff]
        %v434 = vld [vmem:[%s8 + $0x30] sm:$0xff]
        %v435 = vld [vmem:[%s8 + $0x38] sm:$0xff]
        %437 = vrot.lane.b32.xlu0 %v412, 125
        %v438 = vpop.permute.xlu0 %437
        %v440 = vmul.f32 %v412, %v438
        %442 = vrot.lane.b32.xlu0 %v411, 3
        %v443 = vpop.permute.xlu0 %442
        %v445 = vsub.f32 %v411, %v443
        %447 = vrot.lane.b32.xlu0 %v440, 3
        %v448 = vpop.permute.xlu0 %447
        %v450 = vmul.f32 %v445, %v448
        %v451 = vlaneseq
        %v452 = vshrl.u32 %v451, 7
        %v453 = vsub.s32 0, %v452
        %v454 = vrot.slane %v440, %v453
        %v456 = vmul.f32 %v413, %v454
        %v458 = vlaneseq
        %v459 = vshrl.u32 %v458, 7
        %v460 = vsub.s32 0, %v459
        %v461 = vrot.slane %v450, %v460
        %464 = vset.pattern.permute.xlu0 0
        %465 = vperm.xlu0 %464, %v414
        %v466 = vpop.permute.xlu0 %465
        %v468 = vmul.f32 %v461, %v466
        %470 = vset.pattern.permute.xlu0 0
        %471 = vperm.xlu0 %470, %v415
        %v472 = vpop.permute.xlu0 %471
        %v474 = vadd.f32 %v468, %v472
        %v475 = vand.u32 2147483647, %v474
        %vm476 = vcmp.le.f32.partialorder %v475, 0.7853982
        %vm477 = vcmp.lt.s32.totalorder %v474, 0
        %v478 = vand.u32 %v474, 2139095040
        %v479 = vshrl.u32 %v478, 23
        %v480 = vsub.s32 %v479, 127
        %v481 = vand.u32 2147483647, %v474
        %v482 = vand.u32 %v481, 8388607
        %v483 = vor.u32 %v482, 8388608
        %v484 = vsub.s32 0, %v483
        %v485 = vadd.s32 %v480, 1
        %vm486 = vcmp.gt.s32.totalorder %v485, 0
        %v487 = vsel %vm486, %v485, 0
        %v488 = vshrl.u32 %v487, 5
        %v489 = vand.u32 %v487, 31
        %v490 = vsub.s32 32, %v489
        %v491 = vshrl.u32 683565275, %v490
        %v492 = vshll.u32 683565275, %v489
        %v493 = vshrl.u32 2475754826, %v490
        %v494 = vor.u32 %v492, %v493
        %v495 = vshll.u32 2475754826, %v489
        %v496 = vshrl.u32 2131351028, %v490
        %v497 = vor.u32 %v495, %v496
        %v498 = vshll.u32 2131351028, %v489
        %v499 = vshrl.u32 2102212464, %v490
        %v500 = vor.u32 %v498, %v499
        %v501 = vshll.u32 2102212464, %v489
        %v502 = vshrl.u32 920167782, %v490
        %v503 = vor.u32 %v501, %v502
        %v504 = vshll.u32 920167782, %v489
        %v505 = vshrl.u32 1326507024, %v490
        %v506 = vor.u32 %v504, %v505
        %vm507 = vcmp.lt.s32.totalorder %v488, 1
        %vm508 = vcmp.lt.s32.totalorder %v488, 2
        %vm509 = vcmp.lt.s32.totalorder %v488, 3
        %vm510 = vcmp.lt.s32.totalorder %v488, 4
        %v511 = vsel %vm507, %v491, %v494
        %v512 = vsel %vm510, %v500, 2102212464
        %v513 = vsel %vm509, %v497, %v512
        %v514 = vsel %vm508, %v511, %v513
        %v515 = vsel %vm507, %v494, %v497
        %v516 = vsel %vm510, %v503, 920167782
        %v517 = vsel %vm509, %v500, %v516
        %v518 = vsel %vm508, %v515, %v517
        %v519 = vsel %vm507, %v497, %v500
        %v520 = vsel %vm510, %v506, 1326507024
        %v521 = vsel %vm509, %v503, %v520
        %v522 = vsel %vm508, %v519, %v521
        %v523 = vshll.u32 %v483, 8
        %v524 = vmul.u32.u64.compose %v523, %v522
        %v525 = vextract.low.u32 %v524
        %v526 = vextract.high.u32 %v524
        %v527 = vmul.u32.u64.compose %v523, %v518
        %v528 = vextract.low.u32 %v527
        %v529 = vextract.high.u32 %v527
        %v530 = vmul.u32 %v523, %v514
        %v531 = vadd.s32 %v526, %v528
        %vm532 = vc.u32 %v526, %v528
        %v533 = vadd.s32 %v529, 1
        %v534 = vsel %vm532, %v533, %v529
        %v535 = vadd.s32 %v530, %v534
        %v536 = vadd.s32 %v535, 536870912
        %v537 = vshrl.u32 %v536, 30
        %v538 = vshll.u32 %v537, 30
        %v539 = vsub.s32 %v535, %v538
        %vm540 = vcmp.lt.s32.totalorder %v539, 0
        %v541 = vsub.s32 0, %v539
        %v542 = vsel %vm540, %v541, %v539
        %v543 = vclz %v542
        %v544 = vsub.s32 %v543, 2
        %vm545 = vcmp.gt.s32.totalorder 0, %v544
        %v546 = vsel %vm545, 0, %v544
        %v547 = vsub.s32 32, %v546
        %v548 = vshll.u32 %v539, %v546
        %v549 = vshrl.u32 %v531, %v547
        %v550 = vor.u32 %v548, %v549
        %v551 = vsub.s32 4294967266, %v546
        %v552 = vadd.s32 %v551, 127
        %v553 = vshll.u32 %v552, 23
        %v554 = vor.u32 4788187, %v553
        %v555 = vand.u32 2147483647, %v554
        %v557 = vcvt.s32.f32 %v550
        %v558 = vmul.f32 %v557, %v555
        %v559 = vxor.u32 %v558, 2147483648
        %v560 = vsel %vm477, %v559, %v558
        %v561 = vsub.s32 4, %v537
        %v562 = vsel %vm477, %v561, %v537
        %v563 = vsel %vm476, %v474, %v560
        %v564 = vsel %vm476, 0, %v562
        %v565 = vcosq.f32.pop %v563
        %v566 = vsinq.f32.pop %v563
        %vm567 = vweird.f32 %v474
        %v568 = vadd.s32 %v564, 3
        %v569 = vand.u32 %v568, 3
        %vm570 = vcmp.lt.s32.totalorder %v569, 2
        %vm571 = vcmp.eq.s32.totalorder %v569, 0
        %v572 = vxor.u32 %v566, 2147483648
        %v573 = vsel %vm571, %v565, %v572
        %vm574 = vcmp.eq.s32.totalorder %v569, 2
        %v575 = vxor.u32 %v565, 2147483648
        %v576 = vsel %vm574, %v575, %v566
        %v577 = vsel %vm570, %v573, %v576
        %v578 = vsel %vm567, nan, %v577
        %v579 = vpack.c.bf16 %v578, %v578
        %581 = vset.pattern.permute.xlu0 0
        %582 = vperm.xlu0 %581, %v418
        %v583 = vpop.permute.xlu0 %582
        %586 = vset.pattern.permute.xlu0 0
        %587 = vperm.xlu0 %586, %v419
        %v588 = vpop.permute.xlu0 %587
        %v592 = vunpack.c.l.b16 %v416
        %v593 = vunpack.c.l.b16 %v417
        %v594 = vpack.c.b16 %v593, %v592
        %596 = vrot.lane.b32.xlu0 %v579, 125
        %v597 = vpop.permute.xlu0 %596
        %vm598 = vcmask 64512
        %v600 = vsel %vm598, %v594, 0
        %vm602 = vcmask 1043456
        %v604 = vsel %vm602, %v597, 0
        %606 = vmatprep.subr.bf16.mxu0 0
        %607 = vmatpush1.bf16.msra.mxu0 %v604
        %608 = vmatprep.subr.bf16.mxu0 0
        %609 = vmatpush1.bf16.msra.mxu0 0
        %610 = vmatprep.subr.bf16.mxu0 0
        %611 = vmatpush1.bf16.msra.mxu0 0
        %612 = vmatprep.subr.bf16.mxu0 0
        %613 = vmatpush1.bf16.msra.mxu0 0
        %614 = vmatprep.subr.bf16.mxu0 0
        %615 = vmatpush1.bf16.msra.mxu0 0
        %616 = vmatprep.subr.bf16.mxu0 0
        %617 = vmatpush1.bf16.msra.mxu0 0
        %618 = vmatprep.subr.bf16.mxu0 0
        %619 = vmatpush1.bf16.msra.mxu0 0
        %620 = vmatprep.subr.bf16.mxu0 0
        %621 = vmatpush1.bf16.msra.mxu0 0
        %622 = vmatprep.subr.bf16.mxu0 0
        %623 = vmatpush1.bf16.msra.mxu0 0
        %624 = vmatprep.subr.bf16.mxu0 0
        %625 = vmatpush1.bf16.msra.mxu0 0
        %626 = vmatprep.subr.bf16.mxu0 0
        %627 = vmatpush1.bf16.msra.mxu0 0
        %628 = vmatprep.subr.bf16.mxu0 0
        %629 = vmatpush1.bf16.msra.mxu0 0
        %630 = vmatprep.subr.bf16.mxu0 0
        %631 = vmatpush1.bf16.msra.mxu0 0
        %632 = vmatprep.subr.bf16.mxu0 0
        %633 = vmatpush1.bf16.msra.mxu0 0
        %634 = vmatprep.subr.bf16.mxu0 0
        %635 = vmatpush1.bf16.msra.mxu0 0
        %636 = vmatprep.subr.bf16.mxu0 0
        %637 = vmatpush1.bf16.msra.mxu0 0
        %638 = vmatprep.mubr.bf16.mxu0 0
        %639 = vmatmul.mubr.bf16.gmra.mrb[0].mxu0 %v600
        %v640 = vpop.f32.mrb[0].mxu0
        %v641 = vadd.f32 %v583, %v640
        %v642 = vpop.f32.mrb[0].mxu0
        %v643 = vpop.f32.mrb[0].mxu0
        %v644 = vadd.f32 %v588, %v643
        %v645 = vpop.f32.mrb[0].mxu0
        %646 = vdwg.mxu0
        %vm647 = vcmp.ge.f32.partialorder %v641, 0.0
        %vm648 = vcmp.ge.f32.partialorder %v644, 0.0
        %v649 = vmul.f32 %v641, 0.1
        %v650 = vmul.f32 %v644, 0.1
        %v651 = vsel %vm647, %v641, %v649
        %v652 = vsel %vm648, %v644, %v650
        %v653 = vpack.c.bf16 %v652, %v651
        %655 = vset.pattern.permute.xlu0 0
        %656 = vperm.xlu0 %655, %v428
        %v657 = vpop.permute.xlu0 %656
        %660 = vset.pattern.permute.xlu0 0
        %661 = vperm.xlu0 %660, %v429
        %v662 = vpop.permute.xlu0 %661
        %665 = vset.pattern.permute.xlu0 0
        %666 = vperm.xlu0 %665, %v430
        %v667 = vpop.permute.xlu0 %666
        %670 = vset.pattern.permute.xlu0 0
        %671 = vperm.xlu0 %670, %v431
        %v672 = vpop.permute.xlu0 %671
        %675 = vset.pattern.permute.xlu0 0
        %676 = vperm.xlu0 %675, %v432
        %v677 = vpop.permute.xlu0 %676
        %680 = vset.pattern.permute.xlu0 0
        %681 = vperm.xlu0 %680, %v433
        %v682 = vpop.permute.xlu0 %681
        %685 = vset.pattern.permute.xlu0 0
        %686 = vperm.xlu0 %685, %v434
        %v687 = vpop.permute.xlu0 %686
        %690 = vset.pattern.permute.xlu0 0
        %691 = vperm.xlu0 %690, %v435
        %v692 = vpop.permute.xlu0 %691
        %v702 = vunpack.c.l.b16 %v420
        %v703 = vunpack.c.l.b16 %v421
        %v704 = vunpack.c.l.b16 %v422
        %v705 = vunpack.c.l.b16 %v423
        %v706 = vunpack.c.l.b16 %v424
        %v707 = vunpack.c.l.b16 %v425
        %v708 = vunpack.c.l.b16 %v426
        %v709 = vunpack.c.l.b16 %v427
        %v710 = vpack.c.b16 %v703, %v702
        %v711 = vpack.c.b16 %v705, %v704
        %v712 = vpack.c.b16 %v707, %v706
        %v713 = vpack.c.b16 %v709, %v708
        %vm714 = vcmask 130048
        %v716 = vsel %vm714, %v710, 0
        %v719 = vsel %vm714, %v711, 0
        %v722 = vsel %vm714, %v712, 0
        %v725 = vsel %vm714, %v713, 0
        %727 = vmatprep.subr.bf16.mxu0 0
        %728 = vmatpush1.bf16.msra.mxu0 %v653
        %729 = vmatprep.subr.bf16.mxu0 0
        %730 = vmatpush1.bf16.msra.mxu0 0
        %731 = vmatprep.subr.bf16.mxu0 0
        %732 = vmatpush1.bf16.msra.mxu0 0
        %733 = vmatprep.subr.bf16.mxu0 0
        %734 = vmatpush1.bf16.msra.mxu0 0
        %735 = vmatprep.subr.bf16.mxu0 0
        %736 = vmatpush1.bf16.msra.mxu0 0
        %737 = vmatprep.subr.bf16.mxu0 0
        %738 = vmatpush1.bf16.msra.mxu0 0
        %739 = vmatprep.subr.bf16.mxu0 0
        %740 = vmatpush1.bf16.msra.mxu0 0
        %741 = vmatprep.subr.bf16.mxu0 0
        %742 = vmatpush1.bf16.msra.mxu0 0
        %743 = vmatprep.subr.bf16.mxu0 0
        %744 = vmatpush1.bf16.msra.mxu0 0
        %745 = vmatprep.subr.bf16.mxu0 0
        %746 = vmatpush1.bf16.msra.mxu0 0
        %747 = vmatprep.subr.bf16.mxu0 0
        %748 = vmatpush1.bf16.msra.mxu0 0
        %749 = vmatprep.subr.bf16.mxu0 0
        %750 = vmatpush1.bf16.msra.mxu0 0
        %751 = vmatprep.subr.bf16.mxu0 0
        %752 = vmatpush1.bf16.msra.mxu0 0
        %753 = vmatprep.subr.bf16.mxu0 0
        %754 = vmatpush1.bf16.msra.mxu0 0
        %755 = vmatprep.subr.bf16.mxu0 0
        %756 = vmatpush1.bf16.msra.mxu0 0
        %757 = vmatprep.subr.bf16.mxu0 0
        %758 = vmatpush1.bf16.msra.mxu0 0
        %759 = vmatprep.mubr.bf16.mxu0 0
        %760 = vmatmul.mubr.bf16.gmra.mrb[0].mxu0 %v716
        %v761 = vpop.f32.mrb[0].mxu0
        %v762 = vadd.f32 %v657, %v761
        %v763 = vpop.f32.mrb[0].mxu0
        %v764 = vpop.f32.mrb[0].mxu0
        %v765 = vadd.f32 %v662, %v764
        %v766 = vpop.f32.mrb[0].mxu0
        %767 = vmatprep.mubr.bf16.mxu0 0
        %768 = vmatmul.mubr.bf16.gmra.mrb[0].mxu0 %v719
        %v769 = vpop.f32.mrb[0].mxu0
        %v770 = vadd.f32 %v667, %v769
        %v771 = vpop.f32.mrb[0].mxu0
        %v772 = vpop.f32.mrb[0].mxu0
        %v773 = vadd.f32 %v672, %v772
        %v774 = vpop.f32.mrb[0].mxu0
        %775 = vmatprep.mubr.bf16.mxu0 0
        %776 = vmatmul.mubr.bf16.gmra.mrb[0].mxu0 %v722
        %v777 = vpop.f32.mrb[0].mxu0
        %v778 = vadd.f32 %v677, %v777
        %v779 = vpop.f32.mrb[0].mxu0
        %v780 = vpop.f32.mrb[0].mxu0
        %v781 = vadd.f32 %v682, %v780
        %v782 = vpop.f32.mrb[0].mxu0
        %783 = vmatprep.mubr.bf16.mxu0 0
        %784 = vmatmul.mubr.bf16.gmra.mrb[0].mxu0 %v725
        %v785 = vpop.f32.mrb[0].mxu0
        %v786 = vadd.f32 %v687, %v785
        %v787 = vpop.f32.mrb[0].mxu0
        %v788 = vpop.f32.mrb[0].mxu0
        %v789 = vadd.f32 %v692, %v788
        %v790 = vpop.f32.mrb[0].mxu0
        %791 = vdwg.mxu0
        %v793 = vcombine.high %v456, %v456
        %v795 = vunpack.c.l.s4 1966171168
        %v796 = vunpack.c.0.s8 %v795
        %v797 = vlaneseq
        %v798 = vshrl.u32 %v797, 7
        %v799 = vsub.s32 %v796, %v798
        %v800 = vrot.slane %v456, %v799
        %v802 = vunpack.c.l.s4 1966171168
        %v803 = vunpack.c.0.s8 %v802
        %v804 = vlaneseq
        %v805 = vshrl.u32 %v804, 7
        %v806 = vsub.s32 %v803, %v805
        %v807 = vrot.slane %v793, %v806
        %v808 = vcombine.high %v800, %v800
        %v809 = vcombine.high %v807, %v807
        %v811 = vunpack.c.l.s4 1966171168
        %v812 = vunpack.c.0.s8 %v811
        %v813 = vlaneseq
        %v814 = vshrl.u32 %v813, 7
        %v815 = vsub.s32 %v812, %v814
        %v816 = vrot.slane %v800, %v815
        %v818 = vunpack.c.l.s4 1966171168
        %v819 = vunpack.c.0.s8 %v818
        %v820 = vlaneseq
        %v821 = vshrl.u32 %v820, 7
        %v822 = vsub.s32 %v819, %v821
        %v823 = vrot.slane %v807, %v822
        %v825 = vunpack.c.l.s4 1966171168
        %v826 = vunpack.c.0.s8 %v825
        %v827 = vlaneseq
        %v828 = vshrl.u32 %v827, 7
        %v829 = vsub.s32 %v826, %v828
        %v830 = vrot.slane %v808, %v829
        %v832 = vunpack.c.l.s4 1966171168
        %v833 = vunpack.c.0.s8 %v832
        %v834 = vlaneseq
        %v835 = vshrl.u32 %v834, 7
        %v836 = vsub.s32 %v833, %v835
        %v837 = vrot.slane %v809, %v836
        %v838 = vcombine.high %v816, %v816
        %v839 = vcombine.high %v823, %v823
        %v840 = vcombine.high %v830, %v830
        %v841 = vcombine.high %v837, %v837
        %v842 = vlaneseq
        %v843 = vshrl.u32 %v842, 7
        %v844 = vsub.s32 0, %v843
        %v845 = vrot.slane %v816, %v844
        %v846 = vlaneseq
        %v847 = vshrl.u32 %v846, 7
        %v848 = vsub.s32 0, %v847
        %v849 = vrot.slane %v830, %v848
        %v850 = vlaneseq
        %v851 = vshrl.u32 %v850, 7
        %v852 = vsub.s32 0, %v851
        %v853 = vrot.slane %v838, %v852
        %v854 = vlaneseq
        %v855 = vshrl.u32 %v854, 7
        %v856 = vsub.s32 0, %v855
        %v857 = vrot.slane %v840, %v856
        %v858 = vlaneseq
        %v859 = vshrl.u32 %v858, 7
        %v860 = vsub.s32 0, %v859
        %v861 = vrot.slane %v823, %v860
        %v862 = vlaneseq
        %v863 = vshrl.u32 %v862, 7
        %v864 = vsub.s32 0, %v863
        %v865 = vrot.slane %v837, %v864
        %v866 = vlaneseq
        %v867 = vshrl.u32 %v866, 7
        %v868 = vsub.s32 0, %v867
        %v869 = vrot.slane %v839, %v868
        %v870 = vlaneseq
        %v871 = vshrl.u32 %v870, 7
        %v872 = vsub.s32 0, %v871
        %v873 = vrot.slane %v841, %v872
        %v882 = vmul.f32 %v845, %v762
        %v883 = vmul.f32 %v849, %v765
        %v884 = vmul.f32 %v853, %v770
        %v885 = vmul.f32 %v857, %v773
        %v886 = vmul.f32 %v861, %v778
        %v887 = vmul.f32 %v865, %v781
        %v888 = vmul.f32 %v869, %v786
        %v889 = vmul.f32 %v873, %v789
        %v890 = vsel %vm714, %v882, 0.0
        %v891 = vsel %vm714, %v883, 0.0
        %v892 = vadd.f32 %v890, %v891
        %v893 = vsel %vm714, %v884, 0.0
        %v894 = vadd.f32 %v892, %v893
        %v895 = vsel %vm714, %v885, 0.0
        %v896 = vadd.f32 %v894, %v895
        %v897 = vsel %vm714, %v886, 0.0
        %v898 = vadd.f32 %v896, %v897
        %v899 = vsel %vm714, %v887, 0.0
        %v900 = vadd.f32 %v898, %v899
        %v901 = vsel %vm714, %v888, 0.0
        %v902 = vadd.f32 %v900, %v901
        %v903 = vsel %vm714, %v889, 0.0
        %v904 = vadd.f32 %v902, %v903
        %v905 = vadd.f32 %v904, 0.0
        %906 = vrot.lane.b32.xlu0 %v412, 126
        %v907 = vpop.permute.xlu0 %906
        %v909 = vmul.f32 %v412, %v907
        %910 = vrot.lane.b32.xlu0 %v411, 2
        %v911 = vpop.permute.xlu0 %910
        %v913 = vsub.f32 %v411, %v911
        %915 = vrot.lane.b32.xlu0 %v909, 2
        %v916 = vpop.permute.xlu0 %915
        %v918 = vmul.f32 %v913, %v916
        %v919 = vlaneseq
        %v920 = vshrl.u32 %v919, 7
        %v921 = vsub.s32 0, %v920
        %v922 = vrot.slane %v909, %v921
        %v924 = vmul.f32 %v413, %v922
        %v926 = vlaneseq
        %v927 = vshrl.u32 %v926, 7
        %v928 = vsub.s32 0, %v927
        %v929 = vrot.slane %v918, %v928
        %v931 = vmul.f32 %v929, %v466
        %v932 = vadd.f32 %v931, %v472
        %v933 = vand.u32 2147483647, %v932
        %vm934 = vcmp.le.f32.partialorder %v933, 0.7853982
        %vm935 = vcmp.lt.s32.totalorder %v932, 0
        %v936 = vand.u32 %v932, 2139095040
        %v937 = vshrl.u32 %v936, 23
        %v938 = vsub.s32 %v937, 127
        %v939 = vand.u32 2147483647, %v932
        %v940 = vand.u32 %v939, 8388607
        %v941 = vor.u32 %v940, 8388608
        %v942 = vsub.s32 0, %v941
        %v943 = vadd.s32 %v938, 1
        %vm944 = vcmp.gt.s32.totalorder %v943, 0
        %v945 = vsel %vm944, %v943, 0
        %v946 = vshrl.u32 %v945, 5
        %v947 = vand.u32 %v945, 31
        %v948 = vsub.s32 32, %v947
        %v949 = vshrl.u32 683565275, %v948
        %v950 = vshll.u32 683565275, %v947
        %v951 = vshrl.u32 2475754826, %v948
        %v952 = vor.u32 %v950, %v951
        %v953 = vshll.u32 2475754826, %v947
        %v954 = vshrl.u32 2131351028, %v948
        %v955 = vor.u32 %v953, %v954
        %v956 = vshll.u32 2131351028, %v947
        %v957 = vshrl.u32 2102212464, %v948
        %v958 = vor.u32 %v956, %v957
        %v959 = vshll.u32 2102212464, %v947
        %v960 = vshrl.u32 920167782, %v948
        %v961 = vor.u32 %v959, %v960
        %v962 = vshll.u32 920167782, %v947
        %v963 = vshrl.u32 1326507024, %v948
        %v964 = vor.u32 %v962, %v963
        %vm965 = vcmp.lt.s32.totalorder %v946, 1
        %vm966 = vcmp.lt.s32.totalorder %v946, 2
        %vm967 = vcmp.lt.s32.totalorder %v946, 3
        %vm968 = vcmp.lt.s32.totalorder %v946, 4
        %v969 = vsel %vm965, %v949, %v952
        %v970 = vsel %vm968, %v958, 2102212464
        %v971 = vsel %vm967, %v955, %v970
        %v972 = vsel %vm966, %v969, %v971
        %v973 = vsel %vm965, %v952, %v955
        %v974 = vsel %vm968, %v961, 920167782
        %v975 = vsel %vm967, %v958, %v974
        %v976 = vsel %vm966, %v973, %v975
        %v977 = vsel %vm965, %v955, %v958
        %v978 = vsel %vm968, %v964, 1326507024
        %v979 = vsel %vm967, %v961, %v978
        %v980 = vsel %vm966, %v977, %v979
        %v981 = vshll.u32 %v941, 8
        %v982 = vmul.u32.u64.compose %v981, %v980
        %v983 = vextract.low.u32 %v982
        %v984 = vextract.high.u32 %v982
        %v985 = vmul.u32.u64.compose %v981, %v976
        %v986 = vextract.low.u32 %v985
        %v987 = vextract.high.u32 %v985
        %v988 = vmul.u32 %v981, %v972
        %v989 = vadd.s32 %v984, %v986
        %vm990 = vc.u32 %v984, %v986
        %v991 = vadd.s32 %v987, 1
        %v992 = vsel %vm990, %v991, %v987
        %v993 = vadd.s32 %v988, %v992
        %v994 = vadd.s32 %v993, 536870912
        %v995 = vshrl.u32 %v994, 30
        %v996 = vshll.u32 %v995, 30
        %v997 = vsub.s32 %v993, %v996
        %vm998 = vcmp.lt.s32.totalorder %v997, 0
        %v999 = vsub.s32 0, %v997
        %v1000 = vsel %vm998, %v999, %v997
        %v1001 = vclz %v1000
        %v1002 = vsub.s32 %v1001, 2
        %vm1003 = vcmp.gt.s32.totalorder 0, %v1002
        %v1004 = vsel %vm1003, 0, %v1002
        %v1005 = vsub.s32 32, %v1004
        %v1006 = vshll.u32 %v997, %v1004
        %v1007 = vshrl.u32 %v989, %v1005
        %v1008 = vor.u32 %v1006, %v1007
        %v1009 = vsub.s32 4294967266, %v1004
        %v1010 = vadd.s32 %v1009, 127
        %v1011 = vshll.u32 %v1010, 23
        %v1012 = vor.u32 4788187, %v1011
        %v1013 = vand.u32 2147483647, %v1012
        %v1015 = vcvt.s32.f32 %v1008
        %v1016 = vmul.f32 %v1015, %v1013
        %v1017 = vxor.u32 %v1016, 2147483648
        %v1018 = vsel %vm935, %v1017, %v1016
        %v1019 = vsub.s32 4, %v995
        %v1020 = vsel %vm935, %v1019, %v995
        %v1021 = vsel %vm934, %v932, %v1018
        %v1022 = vsel %vm934, 0, %v1020
        %v1023 = vcosq.f32.pop %v1021
        %v1024 = vsinq.f32.pop %v1021
        %vm1025 = vweird.f32 %v932
        %v1026 = vadd.s32 %v1022, 3
        %v1027 = vand.u32 %v1026, 3
        %vm1028 = vcmp.lt.s32.totalorder %v1027, 2
        %vm1029 = vcmp.eq.s32.totalorder %v1027, 0
        %v1030 = vxor.u32 %v1024, 2147483648
        %v1031 = vsel %vm1029, %v1023, %v1030
        %vm1032 = vcmp.eq.s32.totalorder %v1027, 2
        %v1033 = vxor.u32 %v1023, 2147483648
        %v1034 = vsel %vm1032, %v1033, %v1024
        %v1035 = vsel %vm1028, %v1031, %v1034
        %v1036 = vsel %vm1025, nan, %v1035
        %v1037 = vpack.c.bf16 %v1036, %v1036
        %1039 = vrot.lane.b32.xlu0 %v1037, 125
        %v1040 = vpop.permute.xlu0 %1039
        %v1042 = vsel %vm602, %v1040, 0
        %1044 = vmatprep.subr.bf16.mxu0 0
        %1045 = vmatpush1.bf16.msra.mxu0 %v1042
        %1046 = vmatprep.subr.bf16.mxu0 0
        %1047 = vmatpush1.bf16.msra.mxu0 0
        %1048 = vmatprep.subr.bf16.mxu0 0
        %1049 = vmatpush1.bf16.msra.mxu0 0
        %1050 = vmatprep.subr.bf16.mxu0 0
        %1051 = vmatpush1.bf16.msra.mxu0 0
        %1052 = vmatprep.subr.bf16.mxu0 0
        %1053 = vmatpush1.bf16.msra.mxu0 0
        %1054 = vmatprep.subr.bf16.mxu0 0
        %1055 = vmatpush1.bf16.msra.mxu0 0
        %1056 = vmatprep.subr.bf16.mxu0 0
        %1057 = vmatpush1.bf16.msra.mxu0 0
        %1058 = vmatprep.subr.bf16.mxu0 0
        %1059 = vmatpush1.bf16.msra.mxu0 0
        %1060 = vmatprep.subr.bf16.mxu0 0
        %1061 = vmatpush1.bf16.msra.mxu0 0
        %1062 = vmatprep.subr.bf16.mxu0 0
        %1063 = vmatpush1.bf16.msra.mxu0 0
        %1064 = vmatprep.subr.bf16.mxu0 0
        %1065 = vmatpush1.bf16.msra.mxu0 0
        %1066 = vmatprep.subr.bf16.mxu0 0
        %1067 = vmatpush1.bf16.msra.mxu0 0
        %1068 = vmatprep.subr.bf16.mxu0 0
        %1069 = vmatpush1.bf16.msra.mxu0 0
        %1070 = vmatprep.subr.bf16.mxu0 0
        %1071 = vmatpush1.bf16.msra.mxu0 0
        %1072 = vmatprep.subr.bf16.mxu0 0
        %1073 = vmatpush1.bf16.msra.mxu0 0
        %1074 = vmatprep.subr.bf16.mxu0 0
        %1075 = vmatpush1.bf16.msra.mxu0 0
        %1076 = vmatprep.mubr.bf16.mxu0 0
        %1077 = vmatmul.mubr.bf16.gmra.mrb[0].mxu0 %v600
        %v1078 = vpop.f32.mrb[0].mxu0
        %v1079 = vadd.f32 %v583, %v1078
        %v1080 = vpop.f32.mrb[0].mxu0
        %v1081 = vpop.f32.mrb[0].mxu0
        %v1082 = vadd.f32 %v588, %v1081
        %v1083 = vpop.f32.mrb[0].mxu0
        %1084 = vdwg.mxu0
        %vm1085 = vcmp.ge.f32.partialorder %v1079, 0.0
        %vm1086 = vcmp.ge.f32.partialorder %v1082, 0.0
        %v1087 = vmul.f32 %v1079, 0.1
        %v1088 = vmul.f32 %v1082, 0.1
        %v1089 = vsel %vm1085, %v1079, %v1087
        %v1090 = vsel %vm1086, %v1082, %v1088
        %v1091 = vpack.c.bf16 %v1090, %v1089
        %1092 = vmatprep.subr.bf16.mxu0 0
        %1093 = vmatpush1.bf16.msra.mxu0 %v1091
        %1094 = vmatprep.subr.bf16.mxu0 0
        %1095 = vmatpush1.bf16.msra.mxu0 0
        %1096 = vmatprep.subr.bf16.mxu0 0
        %1097 = vmatpush1.bf16.msra.mxu0 0
        %1098 = vmatprep.subr.bf16.mxu0 0
        %1099 = vmatpush1.bf16.msra.mxu0 0
        %1100 = vmatprep.subr.bf16.mxu0 0
        %1101 = vmatpush1.bf16.msra.mxu0 0
        %1102 = vmatprep.subr.bf16.mxu0 0
        %1103 = vmatpush1.bf16.msra.mxu0 0
        %1104 = vmatprep.subr.bf16.mxu0 0
        %1105 = vmatpush1.bf16.msra.mxu0 0
        %1106 = vmatprep.subr.bf16.mxu0 0
        %1107 = vmatpush1.bf16.msra.mxu0 0
        %1108 = vmatprep.subr.bf16.mxu0 0
        %1109 = vmatpush1.bf16.msra.mxu0 0
        %1110 = vmatprep.subr.bf16.mxu0 0
        %1111 = vmatpush1.bf16.msra.mxu0 0
        %1112 = vmatprep.subr.bf16.mxu0 0
        %1113 = vmatpush1.bf16.msra.mxu0 0
        %1114 = vmatprep.subr.bf16.mxu0 0
        %1115 = vmatpush1.bf16.msra.mxu0 0
        %1116 = vmatprep.subr.bf16.mxu0 0
        %1117 = vmatpush1.bf16.msra.mxu0 0
        %1118 = vmatprep.subr.bf16.mxu0 0
        %1119 = vmatpush1.bf16.msra.mxu0 0
        %1120 = vmatprep.subr.bf16.mxu0 0
        %1121 = vmatpush1.bf16.msra.mxu0 0
        %1122 = vmatprep.subr.bf16.mxu0 0
        %1123 = vmatpush1.bf16.msra.mxu0 0
        %1124 = vmatprep.mubr.bf16.mxu0 0
        %1125 = vmatmul.mubr.bf16.gmra.mrb[0].mxu0 %v716
        %v1126 = vpop.f32.mrb[0].mxu0
        %v1127 = vadd.f32 %v657, %v1126
        %v1128 = vpop.f32.mrb[0].mxu0
        %v1129 = vpop.f32.mrb[0].mxu0
        %v1130 = vadd.f32 %v662, %v1129
        %v1131 = vpop.f32.mrb[0].mxu0
        %1132 = vmatprep.mubr.bf16.mxu0 0
        %1133 = vmatmul.mubr.bf16.gmra.mrb[0].mxu0 %v719
        %v1134 = vpop.f32.mrb[0].mxu0
        %v1135 = vadd.f32 %v667, %v1134
        %v1136 = vpop.f32.mrb[0].mxu0
        %v1137 = vpop.f32.mrb[0].mxu0
        %v1138 = vadd.f32 %v672, %v1137
        %v1139 = vpop.f32.mrb[0].mxu0
        %1140 = vmatprep.mubr.bf16.mxu0 0
        %1141 = vmatmul.mubr.bf16.gmra.mrb[0].mxu0 %v722
        %v1142 = vpop.f32.mrb[0].mxu0
        %v1143 = vadd.f32 %v677, %v1142
        %v1144 = vpop.f32.mrb[0].mxu0
        %v1145 = vpop.f32.mrb[0].mxu0
        %v1146 = vadd.f32 %v682, %v1145
        %v1147 = vpop.f32.mrb[0].mxu0
        %1148 = vmatprep.mubr.bf16.mxu0 0
        %1149 = vmatmul.mubr.bf16.gmra.mrb[0].mxu0 %v725
        %v1150 = vpop.f32.mrb[0].mxu0
        %v1151 = vadd.f32 %v687, %v1150
        %v1152 = vpop.f32.mrb[0].mxu0
        %v1153 = vpop.f32.mrb[0].mxu0
        %v1154 = vadd.f32 %v692, %v1153
        %v1155 = vpop.f32.mrb[0].mxu0
        %1156 = vdwg.mxu0
        %v1158 = vcombine.high %v924, %v924
        %v1160 = vunpack.c.l.s4 1966171168
        %v1161 = vunpack.c.0.s8 %v1160
        %v1162 = vlaneseq
        %v1163 = vshrl.u32 %v1162, 7
        %v1164 = vsub.s32 %v1161, %v1163
        %v1165 = vrot.slane %v924, %v1164
        %v1167 = vunpack.c.l.s4 1966171168
        %v1168 = vunpack.c.0.s8 %v1167
        %v1169 = vlaneseq
        %v1170 = vshrl.u32 %v1169, 7
        %v1171 = vsub.s32 %v1168, %v1170
        %v1172 = vrot.slane %v1158, %v1171
        %v1173 = vcombine.high %v1165, %v1165
        %v1174 = vcombine.high %v1172, %v1172
        %v1176 = vunpack.c.l.s4 1966171168
        %v1177 = vunpack.c.0.s8 %v1176
        %v1178 = vlaneseq
        %v1179 = vshrl.u32 %v1178, 7
        %v1180 = vsub.s32 %v1177, %v1179
        %v1181 = vrot.slane %v1165, %v1180
        %v1183 = vunpack.c.l.s4 1966171168
        %v1184 = vunpack.c.0.s8 %v1183
        %v1185 = vlaneseq
        %v1186 = vshrl.u32 %v1185, 7
        %v1187 = vsub.s32 %v1184, %v1186
        %v1188 = vrot.slane %v1172, %v1187
        %v1190 = vunpack.c.l.s4 1966171168
        %v1191 = vunpack.c.0.s8 %v1190
        %v1192 = vlaneseq
        %v1193 = vshrl.u32 %v1192, 7
        %v1194 = vsub.s32 %v1191, %v1193
        %v1195 = vrot.slane %v1173, %v1194
        %v1197 = vunpack.c.l.s4 1966171168
        %v1198 = vunpack.c.0.s8 %v1197
        %v1199 = vlaneseq
        %v1200 = vshrl.u32 %v1199, 7
        %v1201 = vsub.s32 %v1198, %v1200
        %v1202 = vrot.slane %v1174, %v1201
        %v1203 = vcombine.high %v1181, %v1181
        %v1204 = vcombine.high %v1188, %v1188
        %v1205 = vcombine.high %v1195, %v1195
        %v1206 = vcombine.high %v1202, %v1202
        %v1207 = vlaneseq
        %v1208 = vshrl.u32 %v1207, 7
        %v1209 = vsub.s32 0, %v1208
        %v1210 = vrot.slane %v1181, %v1209
        %v1211 = vlaneseq
        %v1212 = vshrl.u32 %v1211, 7
        %v1213 = vsub.s32 0, %v1212
        %v1214 = vrot.slane %v1195, %v1213
        %v1215 = vlaneseq
        %v1216 = vshrl.u32 %v1215, 7
        %v1217 = vsub.s32 0, %v1216
        %v1218 = vrot.slane %v1203, %v1217
        %v1219 = vlaneseq
        %v1220 = vshrl.u32 %v1219, 7
        %v1221 = vsub.s32 0, %v1220
        %v1222 = vrot.slane %v1205, %v1221
        %v1223 = vlaneseq
        %v1224 = vshrl.u32 %v1223, 7
        %v1225 = vsub.s32 0, %v1224
        %v1226 = vrot.slane %v1188, %v1225
        %v1227 = vlaneseq
        %v1228 = vshrl.u32 %v1227, 7
        %v1229 = vsub.s32 0, %v1228
        %v1230 = vrot.slane %v1202, %v1229
        %v1231 = vlaneseq
        %v1232 = vshrl.u32 %v1231, 7
        %v1233 = vsub.s32 0, %v1232
        %v1234 = vrot.slane %v1204, %v1233
        %v1235 = vlaneseq
        %v1236 = vshrl.u32 %v1235, 7
        %v1237 = vsub.s32 0, %v1236
        %v1238 = vrot.slane %v1206, %v1237
        %1255 = vrot.lane.b32.xlu0 %v1127, 1
        %v1256 = vpop.permute.xlu0 %1255
        %1257 = vrot.lane.b32.xlu0 %v1130, 1
        %v1258 = vpop.permute.xlu0 %1257
        %1259 = vrot.lane.b32.xlu0 %v1135, 1
        %v1260 = vpop.permute.xlu0 %1259
        %1261 = vrot.lane.b32.xlu0 %v1138, 1
        %v1262 = vpop.permute.xlu0 %1261
        %1263 = vrot.lane.b32.xlu0 %v1143, 1
        %v1264 = vpop.permute.xlu0 %1263
        %1265 = vrot.lane.b32.xlu0 %v1146, 1
        %v1266 = vpop.permute.xlu0 %1265
        %1267 = vrot.lane.b32.xlu0 %v1151, 1
        %v1268 = vpop.permute.xlu0 %1267
        %1269 = vrot.lane.b32.xlu0 %v1154, 1
        %v1270 = vpop.permute.xlu0 %1269
        %v1279 = vmul.f32 %v1210, %v1256
        %v1280 = vmul.f32 %v1214, %v1258
        %v1281 = vmul.f32 %v1218, %v1260
        %v1282 = vmul.f32 %v1222, %v1262
        %v1283 = vmul.f32 %v1226, %v1264
        %v1284 = vmul.f32 %v1230, %v1266
        %v1285 = vmul.f32 %v1234, %v1268
        %v1286 = vmul.f32 %v1238, %v1270
        %vm1287 = vcmask 138248
        %v1288 = vsel %vm1287, %v1279, 0.0
        %v1289 = vsel %vm1287, %v1280, 0.0
        %v1290 = vadd.f32 %v1288, %v1289
        %v1291 = vsel %vm1287, %v1281, 0.0
        %v1292 = vadd.f32 %v1290, %v1291
        %v1293 = vsel %vm1287, %v1282, 0.0
        %v1294 = vadd.f32 %v1292, %v1293
        %v1295 = vsel %vm1287, %v1283, 0.0
        %v1296 = vadd.f32 %v1294, %v1295
        %v1297 = vsel %vm1287, %v1284, 0.0
        %v1298 = vadd.f32 %v1296, %v1297
        %v1299 = vsel %vm1287, %v1285, 0.0
        %v1300 = vadd.f32 %v1298, %v1299
        %v1301 = vsel %vm1287, %v1286, 0.0
        %v1302 = vadd.f32 %v1300, %v1301
        %1304 = vrot.lane.b32.xlu0 %v1302, 127
        %v1305 = vpop.permute.xlu0 %1304
        %v1307 = vadd.f32 %v905, %v1305
        %1308 = vrot.lane.b32.xlu0 %v412, 127
        %v1309 = vpop.permute.xlu0 %1308
        %v1311 = vmul.f32 %v412, %v1309
        %1312 = vrot.lane.b32.xlu0 %v411, 1
        %v1313 = vpop.permute.xlu0 %1312
        %v1315 = vsub.f32 %v411, %v1313
        %1317 = vrot.lane.b32.xlu0 %v1311, 1
        %v1318 = vpop.permute.xlu0 %1317
        %v1320 = vmul.f32 %v1315, %v1318
        %v1321 = vlaneseq
        %v1322 = vshrl.u32 %v1321, 7
        %v1323 = vsub.s32 0, %v1322
        %v1324 = vrot.slane %v1311, %v1323
        %v1326 = vmul.f32 %v413, %v1324
        %v1328 = vlaneseq
        %v1329 = vshrl.u32 %v1328, 7
        %v1330 = vsub.s32 0, %v1329
        %v1331 = vrot.slane %v1320, %v1330
        %v1333 = vmul.f32 %v1331, %v466
        %v1334 = vadd.f32 %v1333, %v472
        %v1335 = vand.u32 2147483647, %v1334
        %vm1336 = vcmp.le.f32.partialorder %v1335, 0.7853982
        %vm1337 = vcmp.lt.s32.totalorder %v1334, 0
        %v1338 = vand.u32 %v1334, 2139095040
        %v1339 = vshrl.u32 %v1338, 23
        %v1340 = vsub.s32 %v1339, 127
        %v1341 = vand.u32 2147483647, %v1334
        %v1342 = vand.u32 %v1341, 8388607
        %v1343 = vor.u32 %v1342, 8388608
        %v1344 = vsub.s32 0, %v1343
        %v1345 = vadd.s32 %v1340, 1
        %vm1346 = vcmp.gt.s32.totalorder %v1345, 0
        %v1347 = vsel %vm1346, %v1345, 0
        %v1348 = vshrl.u32 %v1347, 5
        %v1349 = vand.u32 %v1347, 31
        %v1350 = vsub.s32 32, %v1349
        %v1351 = vshrl.u32 683565275, %v1350
        %v1352 = vshll.u32 683565275, %v1349
        %v1353 = vshrl.u32 2475754826, %v1350
        %v1354 = vor.u32 %v1352, %v1353
        %v1355 = vshll.u32 2475754826, %v1349
        %v1356 = vshrl.u32 2131351028, %v1350
        %v1357 = vor.u32 %v1355, %v1356
        %v1358 = vshll.u32 2131351028, %v1349
        %v1359 = vshrl.u32 2102212464, %v1350
        %v1360 = vor.u32 %v1358, %v1359
        %v1361 = vshll.u32 2102212464, %v1349
        %v1362 = vshrl.u32 920167782, %v1350
        %v1363 = vor.u32 %v1361, %v1362
        %v1364 = vshll.u32 920167782, %v1349
        %v1365 = vshrl.u32 1326507024, %v1350
        %v1366 = vor.u32 %v1364, %v1365
        %vm1367 = vcmp.lt.s32.totalorder %v1348, 1
        %vm1368 = vcmp.lt.s32.totalorder %v1348, 2
        %vm1369 = vcmp.lt.s32.totalorder %v1348, 3
        %vm1370 = vcmp.lt.s32.totalorder %v1348, 4
        %v1371 = vsel %vm1367, %v1351, %v1354
        %v1372 = vsel %vm1370, %v1360, 2102212464
        %v1373 = vsel %vm1369, %v1357, %v1372
        %v1374 = vsel %vm1368, %v1371, %v1373
        %v1375 = vsel %vm1367, %v1354, %v1357
        %v1376 = vsel %vm1370, %v1363, 920167782
        %v1377 = vsel %vm1369, %v1360, %v1376
        %v1378 = vsel %vm1368, %v1375, %v1377
        %v1379 = vsel %vm1367, %v1357, %v1360
        %v1380 = vsel %vm1370, %v1366, 1326507024
        %v1381 = vsel %vm1369, %v1363, %v1380
        %v1382 = vsel %vm1368, %v1379, %v1381
        %v1383 = vshll.u32 %v1343, 8
        %v1384 = vmul.u32.u64.compose %v1383, %v1382
        %v1385 = vextract.low.u32 %v1384
        %v1386 = vextract.high.u32 %v1384
        %v1387 = vmul.u32.u64.compose %v1383, %v1378
        %v1388 = vextract.low.u32 %v1387
        %v1389 = vextract.high.u32 %v1387
        %v1390 = vmul.u32 %v1383, %v1374
        %v1391 = vadd.s32 %v1386, %v1388
        %vm1392 = vc.u32 %v1386, %v1388
        %v1393 = vadd.s32 %v1389, 1
        %v1394 = vsel %vm1392, %v1393, %v1389
        %v1395 = vadd.s32 %v1390, %v1394
        %v1396 = vadd.s32 %v1395, 536870912
        %v1397 = vshrl.u32 %v1396, 30
        %v1398 = vshll.u32 %v1397, 30
        %v1399 = vsub.s32 %v1395, %v1398
        %vm1400 = vcmp.lt.s32.totalorder %v1399, 0
        %v1401 = vsub.s32 0, %v1399
        %v1402 = vsel %vm1400, %v1401, %v1399
        %v1403 = vclz %v1402
        %v1404 = vsub.s32 %v1403, 2
        %vm1405 = vcmp.gt.s32.totalorder 0, %v1404
        %v1406 = vsel %vm1405, 0, %v1404
        %v1407 = vsub.s32 32, %v1406
        %v1408 = vshll.u32 %v1399, %v1406
        %v1409 = vshrl.u32 %v1391, %v1407
        %v1410 = vor.u32 %v1408, %v1409
        %v1411 = vsub.s32 4294967266, %v1406
        %v1412 = vadd.s32 %v1411, 127
        %v1413 = vshll.u32 %v1412, 23
        %v1414 = vor.u32 4788187, %v1413
        %v1415 = vand.u32 2147483647, %v1414
        %v1417 = vcvt.s32.f32 %v1410
        %v1418 = vmul.f32 %v1417, %v1415
        %v1419 = vxor.u32 %v1418, 2147483648
        %v1420 = vsel %vm1337, %v1419, %v1418
        %v1421 = vsub.s32 4, %v1397
        %v1422 = vsel %vm1337, %v1421, %v1397
        %v1423 = vsel %vm1336, %v1334, %v1420
        %v1424 = vsel %vm1336, 0, %v1422
        %v1425 = vcosq.f32.pop %v1423
        %v1426 = vsinq.f32.pop %v1423
        %vm1427 = vweird.f32 %v1334
        %v1428 = vadd.s32 %v1424, 3
        %v1429 = vand.u32 %v1428, 3
        %vm1430 = vcmp.lt.s32.totalorder %v1429, 2
        %vm1431 = vcmp.eq.s32.totalorder %v1429, 0
        %v1432 = vxor.u32 %v1426, 2147483648
        %v1433 = vsel %vm1431, %v1425, %v1432
        %vm1434 = vcmp.eq.s32.totalorder %v1429, 2
        %v1435 = vxor.u32 %v1425, 2147483648
        %v1436 = vsel %vm1434, %v1435, %v1426
        %v1437 = vsel %vm1430, %v1433, %v1436
        %v1438 = vsel %vm1427, nan, %v1437
        %v1439 = vpack.c.bf16 %v1438, %v1438
        %1441 = vrot.lane.b32.xlu0 %v1439, 125
        %v1442 = vpop.permute.xlu0 %1441
        %v1444 = vsel %vm602, %v1442, 0
        %1446 = vmatprep.subr.bf16.mxu0 0
        %1447 = vmatpush1.bf16.msra.mxu0 %v1444
        %1448 = vmatprep.subr.bf16.mxu0 0
        %1449 = vmatpush1.bf16.msra.mxu0 0
        %1450 = vmatprep.subr.bf16.mxu0 0
        %1451 = vmatpush1.bf16.msra.mxu0 0
        %1452 = vmatprep.subr.bf16.mxu0 0
        %1453 = vmatpush1.bf16.msra.mxu0 0
        %1454 = vmatprep.subr.bf16.mxu0 0
        %1455 = vmatpush1.bf16.msra.mxu0 0
        %1456 = vmatprep.subr.bf16.mxu0 0
        %1457 = vmatpush1.bf16.msra.mxu0 0
        %1458 = vmatprep.subr.bf16.mxu0 0
        %1459 = vmatpush1.bf16.msra.mxu0 0
        %1460 = vmatprep.subr.bf16.mxu0 0
        %1461 = vmatpush1.bf16.msra.mxu0 0
        %1462 = vmatprep.subr.bf16.mxu0 0
        %1463 = vmatpush1.bf16.msra.mxu0 0
        %1464 = vmatprep.subr.bf16.mxu0 0
        %1465 = vmatpush1.bf16.msra.mxu0 0
        %1466 = vmatprep.subr.bf16.mxu0 0
        %1467 = vmatpush1.bf16.msra.mxu0 0
        %1468 = vmatprep.subr.bf16.mxu0 0
        %1469 = vmatpush1.bf16.msra.mxu0 0
        %1470 = vmatprep.subr.bf16.mxu0 0
        %1471 = vmatpush1.bf16.msra.mxu0 0
        %1472 = vmatprep.subr.bf16.mxu0 0
        %1473 = vmatpush1.bf16.msra.mxu0 0
        %1474 = vmatprep.subr.bf16.mxu0 0
        %1475 = vmatpush1.bf16.msra.mxu0 0
        %1476 = vmatprep.subr.bf16.mxu0 0
        %1477 = vmatpush1.bf16.msra.mxu0 0
        %1478 = vmatprep.mubr.bf16.mxu0 0
        %1479 = vmatmul.mubr.bf16.gmra.mrb[0].mxu0 %v600
        %v1480 = vpop.f32.mrb[0].mxu0
        %v1481 = vadd.f32 %v583, %v1480
        %v1482 = vpop.f32.mrb[0].mxu0
        %v1483 = vpop.f32.mrb[0].mxu0
        %v1484 = vadd.f32 %v588, %v1483
        %v1485 = vpop.f32.mrb[0].mxu0
        %1486 = vdwg.mxu0
        %vm1487 = vcmp.ge.f32.partialorder %v1481, 0.0
        %vm1488 = vcmp.ge.f32.partialorder %v1484, 0.0
        %v1489 = vmul.f32 %v1481, 0.1
        %v1490 = vmul.f32 %v1484, 0.1
        %v1491 = vsel %vm1487, %v1481, %v1489
        %v1492 = vsel %vm1488, %v1484, %v1490
        %v1493 = vpack.c.bf16 %v1492, %v1491
        %1494 = vmatprep.subr.bf16.mxu0 0
        %1495 = vmatpush1.bf16.msra.mxu0 %v1493
        %1496 = vmatprep.subr.bf16.mxu0 0
        %1497 = vmatpush1.bf16.msra.mxu0 0
        %1498 = vmatprep.subr.bf16.mxu0 0
        %1499 = vmatpush1.bf16.msra.mxu0 0
        %1500 = vmatprep.subr.bf16.mxu0 0
        %1501 = vmatpush1.bf16.msra.mxu0 0
        %1502 = vmatprep.subr.bf16.mxu0 0
        %1503 = vmatpush1.bf16.msra.mxu0 0
        %1504 = vmatprep.subr.bf16.mxu0 0
        %1505 = vmatpush1.bf16.msra.mxu0 0
        %1506 = vmatprep.subr.bf16.mxu0 0
        %1507 = vmatpush1.bf16.msra.mxu0 0
        %1508 = vmatprep.subr.bf16.mxu0 0
        %1509 = vmatpush1.bf16.msra.mxu0 0
        %1510 = vmatprep.subr.bf16.mxu0 0
        %1511 = vmatpush1.bf16.msra.mxu0 0
        %1512 = vmatprep.subr.bf16.mxu0 0
        %1513 = vmatpush1.bf16.msra.mxu0 0
        %1514 = vmatprep.subr.bf16.mxu0 0
        %1515 = vmatpush1.bf16.msra.mxu0 0
        %1516 = vmatprep.subr.bf16.mxu0 0
        %1517 = vmatpush1.bf16.msra.mxu0 0
        %1518 = vmatprep.subr.bf16.mxu0 0
        %1519 = vmatpush1.bf16.msra.mxu0 0
        %1520 = vmatprep.subr.bf16.mxu0 0
        %1521 = vmatpush1.bf16.msra.mxu0 0
        %1522 = vmatprep.subr.bf16.mxu0 0
        %1523 = vmatpush1.bf16.msra.mxu0 0
        %1524 = vmatprep.subr.bf16.mxu0 0
        %1525 = vmatpush1.bf16.msra.mxu0 0
        %1526 = vmatprep.mubr.bf16.mxu0 0
        %1527 = vmatmul.mubr.bf16.gmra.mrb[0].mxu0 %v716
        %v1528 = vpop.f32.mrb[0].mxu0
        %v1529 = vadd.f32 %v657, %v1528
        %v1530 = vpop.f32.mrb[0].mxu0
        %v1531 = vpop.f32.mrb[0].mxu0
        %v1532 = vadd.f32 %v662, %v1531
        %v1533 = vpop.f32.mrb[0].mxu0
        %1534 = vmatprep.mubr.bf16.mxu0 0
        %1535 = vmatmul.mubr.bf16.gmra.mrb[0].mxu0 %v719
        %v1536 = vpop.f32.mrb[0].mxu0
        %v1537 = vadd.f32 %v667, %v1536
        %v1538 = vpop.f32.mrb[0].mxu0
        %v1539 = vpop.f32.mrb[0].mxu0
        %v1540 = vadd.f32 %v672, %v1539
        %v1541 = vpop.f32.mrb[0].mxu0
        %1542 = vmatprep.mubr.bf16.mxu0 0
        %1543 = vmatmul.mubr.bf16.gmra.mrb[0].mxu0 %v722
        %v1544 = vpop.f32.mrb[0].mxu0
        %v1545 = vadd.f32 %v677, %v1544
        %v1546 = vpop.f32.mrb[0].mxu0
        %v1547 = vpop.f32.mrb[0].mxu0
        %v1548 = vadd.f32 %v682, %v1547
        %v1549 = vpop.f32.mrb[0].mxu0
        %1550 = vmatprep.mubr.bf16.mxu0 0
        %1551 = vmatmul.mubr.bf16.gmra.mrb[0].mxu0 %v725
        %v1552 = vpop.f32.mrb[0].mxu0
        %v1553 = vadd.f32 %v687, %v1552
        %v1554 = vpop.f32.mrb[0].mxu0
        %v1555 = vpop.f32.mrb[0].mxu0
        %v1556 = vadd.f32 %v692, %v1555
        %v1557 = vpop.f32.mrb[0].mxu0
        %1558 = vdwg.mxu0
        %v1560 = vcombine.high %v1326, %v1326
        %v1562 = vunpack.c.l.s4 1966171168
        %v1563 = vunpack.c.0.s8 %v1562
        %v1564 = vlaneseq
        %v1565 = vshrl.u32 %v1564, 7
        %v1566 = vsub.s32 %v1563, %v1565
        %v1567 = vrot.slane %v1326, %v1566
        %v1569 = vunpack.c.l.s4 1966171168
        %v1570 = vunpack.c.0.s8 %v1569
        %v1571 = vlaneseq
        %v1572 = vshrl.u32 %v1571, 7
        %v1573 = vsub.s32 %v1570, %v1572
        %v1574 = vrot.slane %v1560, %v1573
        %v1575 = vcombine.high %v1567, %v1567
        %v1576 = vcombine.high %v1574, %v1574
        %v1578 = vunpack.c.l.s4 1966171168
        %v1579 = vunpack.c.0.s8 %v1578
        %v1580 = vlaneseq
        %v1581 = vshrl.u32 %v1580, 7
        %v1582 = vsub.s32 %v1579, %v1581
        %v1583 = vrot.slane %v1567, %v1582
        %v1585 = vunpack.c.l.s4 1966171168
        %v1586 = vunpack.c.0.s8 %v1585
        %v1587 = vlaneseq
        %v1588 = vshrl.u32 %v1587, 7
        %v1589 = vsub.s32 %v1586, %v1588
        %v1590 = vrot.slane %v1574, %v1589
        %v1592 = vunpack.c.l.s4 1966171168
        %v1593 = vunpack.c.0.s8 %v1592
        %v1594 = vlaneseq
        %v1595 = vshrl.u32 %v1594, 7
        %v1596 = vsub.s32 %v1593, %v1595
        %v1597 = vrot.slane %v1575, %v1596
        %v1599 = vunpack.c.l.s4 1966171168
        %v1600 = vunpack.c.0.s8 %v1599
        %v1601 = vlaneseq
        %v1602 = vshrl.u32 %v1601, 7
        %v1603 = vsub.s32 %v1600, %v1602
        %v1604 = vrot.slane %v1576, %v1603
        %v1605 = vcombine.high %v1583, %v1583
        %v1606 = vcombine.high %v1590, %v1590
        %v1607 = vcombine.high %v1597, %v1597
        %v1608 = vcombine.high %v1604, %v1604
        %v1609 = vlaneseq
        %v1610 = vshrl.u32 %v1609, 7
        %v1611 = vsub.s32 0, %v1610
        %v1612 = vrot.slane %v1583, %v1611
        %v1613 = vlaneseq
        %v1614 = vshrl.u32 %v1613, 7
        %v1615 = vsub.s32 0, %v1614
        %v1616 = vrot.slane %v1597, %v1615
        %v1617 = vlaneseq
        %v1618 = vshrl.u32 %v1617, 7
        %v1619 = vsub.s32 0, %v1618
        %v1620 = vrot.slane %v1605, %v1619
        %v1621 = vlaneseq
        %v1622 = vshrl.u32 %v1621, 7
        %v1623 = vsub.s32 0, %v1622
        %v1624 = vrot.slane %v1607, %v1623
        %v1625 = vlaneseq
        %v1626 = vshrl.u32 %v1625, 7
        %v1627 = vsub.s32 0, %v1626
        %v1628 = vrot.slane %v1590, %v1627
        %v1629 = vlaneseq
        %v1630 = vshrl.u32 %v1629, 7
        %v1631 = vsub.s32 0, %v1630
        %v1632 = vrot.slane %v1604, %v1631
        %v1633 = vlaneseq
        %v1634 = vshrl.u32 %v1633, 7
        %v1635 = vsub.s32 0, %v1634
        %v1636 = vrot.slane %v1606, %v1635
        %v1637 = vlaneseq
        %v1638 = vshrl.u32 %v1637, 7
        %v1639 = vsub.s32 0, %v1638
        %v1640 = vrot.slane %v1608, %v1639
        %1657 = vrot.lane.b32.xlu0 %v1529, 2
        %v1658 = vpop.permute.xlu0 %1657
        %1659 = vrot.lane.b32.xlu0 %v1532, 2
        %v1660 = vpop.permute.xlu0 %1659
        %1661 = vrot.lane.b32.xlu0 %v1537, 2
        %v1662 = vpop.permute.xlu0 %1661
        %1663 = vrot.lane.b32.xlu0 %v1540, 2
        %v1664 = vpop.permute.xlu0 %1663
        %1665 = vrot.lane.b32.xlu0 %v1545, 2
        %v1666 = vpop.permute.xlu0 %1665
        %1667 = vrot.lane.b32.xlu0 %v1548, 2
        %v1668 = vpop.permute.xlu0 %1667
        %1669 = vrot.lane.b32.xlu0 %v1553, 2
        %v1670 = vpop.permute.xlu0 %1669
        %1671 = vrot.lane.b32.xlu0 %v1556, 2
        %v1672 = vpop.permute.xlu0 %1671
        %v1681 = vmul.f32 %v1612, %v1658
        %v1682 = vmul.f32 %v1616, %v1660
        %v1683 = vmul.f32 %v1620, %v1662
        %v1684 = vmul.f32 %v1624, %v1664
        %v1685 = vmul.f32 %v1628, %v1666
        %v1686 = vmul.f32 %v1632, %v1668
        %v1687 = vmul.f32 %v1636, %v1670
        %v1688 = vmul.f32 %v1640, %v1672
        %vm1689 = vcmask 146448
        %v1690 = vsel %vm1689, %v1681, 0.0
        %v1691 = vsel %vm1689, %v1682, 0.0
        %v1692 = vadd.f32 %v1690, %v1691
        %v1693 = vsel %vm1689, %v1683, 0.0
        %v1694 = vadd.f32 %v1692, %v1693
        %v1695 = vsel %vm1689, %v1684, 0.0
        %v1696 = vadd.f32 %v1694, %v1695
        %v1697 = vsel %vm1689, %v1685, 0.0
        %v1698 = vadd.f32 %v1696, %v1697
        %v1699 = vsel %vm1689, %v1686, 0.0
        %v1700 = vadd.f32 %v1698, %v1699
        %v1701 = vsel %vm1689, %v1687, 0.0
        %v1702 = vadd.f32 %v1700, %v1701
        %v1703 = vsel %vm1689, %v1688, 0.0
        %v1704 = vadd.f32 %v1702, %v1703
        %1706 = vrot.lane.b32.xlu0 %v1704, 126
        %v1707 = vpop.permute.xlu0 %1706
        %v1709 = vadd.f32 %v1307, %v1707
        %v1710 = vld [vmem:[%s9] sm:$0xf]
        %v1711 = vpack.c.bf16 %v413, %v413
        %v1712 = vld [vmem:[%s10] sm:$0xff]
        %1714 = vset.pattern.permute.xlu0 0
        %1715 = vperm.xlu0 %1714, %v1712
        %v1716 = vpop.permute.xlu0 %1715
        %1719 = vrot.lane.b32.xlu0 %v1711, 125
        %v1720 = vpop.permute.xlu0 %1719
        %v1722 = vsel %vm598, %v1710, 0
        %v1725 = vsel %vm602, %v1720, 0
        %1727 = vmatprep.subr.bf16.mxu0 0
        %1728 = vmatpush1.bf16.msra.mxu0 %v1725
        %1729 = vmatprep.subr.bf16.mxu0 0
        %1730 = vmatpush1.bf16.msra.mxu0 0
        %1731 = vmatprep.subr.bf16.mxu0 0
        %1732 = vmatpush1.bf16.msra.mxu0 0
        %1733 = vmatprep.subr.bf16.mxu0 0
        %1734 = vmatpush1.bf16.msra.mxu0 0
        %1735 = vmatprep.subr.bf16.mxu0 0
        %1736 = vmatpush1.bf16.msra.mxu0 0
        %1737 = vmatprep.subr.bf16.mxu0 0
        %1738 = vmatpush1.bf16.msra.mxu0 0
        %1739 = vmatprep.subr.bf16.mxu0 0
        %1740 = vmatpush1.bf16.msra.mxu0 0
        %1741 = vmatprep.subr.bf16.mxu0 0
        %1742 = vmatpush1.bf16.msra.mxu0 0
        %1743 = vmatprep.subr.bf16.mxu0 0
        %1744 = vmatpush1.bf16.msra.mxu0 0
        %1745 = vmatprep.subr.bf16.mxu0 0
        %1746 = vmatpush1.bf16.msra.mxu0 0
        %1747 = vmatprep.subr.bf16.mxu0 0
        %1748 = vmatpush1.bf16.msra.mxu0 0
        %1749 = vmatprep.subr.bf16.mxu0 0
        %1750 = vmatpush1.bf16.msra.mxu0 0
        %1751 = vmatprep.subr.bf16.mxu0 0
        %1752 = vmatpush1.bf16.msra.mxu0 0
        %1753 = vmatprep.subr.bf16.mxu0 0
        %1754 = vmatpush1.bf16.msra.mxu0 0
        %1755 = vmatprep.subr.bf16.mxu0 0
        %1756 = vmatpush1.bf16.msra.mxu0 0
        %1757 = vmatprep.subr.bf16.mxu0 0
        %1758 = vmatpush1.bf16.msra.mxu0 0
        %1759 = vmatprep.mubr.bf16.mxu0 0
        %1760 = vmatmul.mubr.bf16.gmra.mrb[0].mxu0 %v1722
        %v1761 = vpop.f32.mrb[0].mxu0
        %v1762 = vadd.f32 %v1716, %v1761
        %v1763 = vpop.f32.mrb[0].mxu0
        %v1764 = vpop.f32.mrb[0].mxu0
        %v1765 = vpop.f32.mrb[0].mxu0
        %1766 = vdwg.mxu0
        %v1767 = vadd.f32 %v1709, %v1762
        %1768 = vst.msk [vmem:[%s399] sm:$0xff] %vm714, %v1767
        %s1769 = sand.u32 %s279, 1
        %s1770 = scalar_lea.sflag [#allocation3], %s1769
        %s1771 = sand.u32 %s279, 1
        %s1772 = smul.addr %s1771, 8
        %s1773 = scalar_lea.vmem [#allocation2], %s1772
        // Predicated region
        $region65: #{tpu_custom_call.1} parent=63 // pred_check
          %p1774 = pneg %p289
        $region66: #{tpu_custom_call.1} parent=63 // pred_check_branch
          %1776 = sbr.rel (%p1774) target = $region68
        $region67: #{tpu_custom_call.1} parent=63 // pred_region
          %s1778 = ssub.s32 128, 128
          %1779 = vsyncadd %s1770, %s1778
          %s1780 = smul.addr %s25, 128
          %s1781 = scalar_lea.hbm %s11, %s1780
          %s1783 = sshll.u32 %s1773, 4
          %s1784 = int_to_ptr.vmem [resolvable:$true] %s1783
          %1786 = dma.vmem_to_hbm [thread:$0]  %s1784, 128, %s1781, %s1770
        $region68: #{tpu_custom_call.1} parent=63 // pred_fallthru
          _
      $region64: #{tpu_custom_call.1} parent=5 // pred_fallthru
        _
      %p1787 = scmp.le.s32.totalorder 2, %s20
      // Predicated region
      $region69: #{tpu_custom_call.1} parent=5 // pred_check
        %p1788 = pneg %p1787
      $region70: #{tpu_custom_call.1} parent=5 // pred_check_branch
        %1790 = sbr.rel (%p1788) target = $region72
      $region71: #{tpu_custom_call.1} parent=5 // pred_region
        %s1791 = ssub.s32 %s20, 2
        // Predicated region
        $region73: #{tpu_custom_call.1} parent=71 // pred_check
          %p1792 = pneg %p295
        $region74: #{tpu_custom_call.1} parent=71 // pred_check_branch
          %1794 = sbr.rel (%p1792) target = $region76
        $region75: #{tpu_custom_call.1} parent=71 // pred_region
          %s1795 = sand.u32 %s280, 1
          %s1796 = scalar_lea.sflag [#allocation3], %s1795
          %s1797 = sand.u32 %s280, 1
          %s1798 = smul.addr %s1797, 8
          %s1799 = scalar_lea.vmem [#allocation2], %s1798
          %1800 = dma.done %s1796, 128
        $region76: #{tpu_custom_call.1} parent=71 // pred_fallthru
          _
      $region72: #{tpu_custom_call.1} parent=5 // pred_fallthru
        _
    $region6: #{tpu_custom_call.1} parent=1 // loop_footer
      %s24 = sadd.s32 1, %s20
    $region7: #{tpu_custom_call.1} parent=1 // loop_footer_branch
      %19 = sbr.rel target = $region3
    $region8: #{tpu_custom_call.1} parent=1 // loop_exit
      _
    %1801 = vsyncpa [#allocation3], 1
    %s1802 = scalar_lea.sflag [#allocation3], 1
    %1803 = vsyncpa %s1802, 1

</llo_original>
